<compile_context>
chip_gen: v7x
topology: tpu7x:2x2x1
jax: 0.10.0
libtpu: 0.0.40
codegen_flags: <defaults>
</compile_context>

<pallas_src>
import functools

import jax
import jax.numpy as jnp
from jax.experimental import pallas as pl
from jax.experimental.pallas import tpu as pltpu


_HALO = 8  # sublane-aligned offset of the data rows inside the in-kernel scratch


# ----------------------------- Pallas kernel ---------------------------------
def _decoder_kernel(x_ref, w1_ref, sh1_ref, w2_ref, sh2_ref, wt_ref, bt_ref,
                    o_ref, xp_s, g_s):
    """Processes one block of Bt batch elements.

    x_ref  : (Bt, L, Cin)        unpadded input block (any float dtype)
    w1_ref : (3, Cin, Cmid)      conv1 weights, BN1 scale folded in (compute dtype)
    sh1_ref: (1, Cmid)           folded BN1 shift (conv bias folded in, f32)
    w2_ref : (3, Cmid, Cmid)     conv2 weights, BN2 scale folded in
    sh2_ref: (1, Cmid)           folded BN2 shift (f32)
    wt_ref : (Cmid, 2*Cout)      transposed-conv weights, both output phases fused
    bt_ref : (1, 2*Cout)         transposed-conv bias, duplicated per phase (f32)
    o_ref  : (Bt, L, 2*Cout)     output; o[b, l, k*Cout + o] == out[b, 2*l + k, o]
    xp_s   : (Bt, L+2H, Cin)     VMEM scratch: in-kernel halo-padded input
    g_s    : (Bt, L+2H, Cmid)    VMEM scratch: halo-padded conv1 activation
    """
    Bt, L, Cin = x_ref.shape
    H = _HALO
    cdt = xp_s.dtype
    Cmid = g_s.shape[-1]
    Cout2 = wt_ref.shape[-1]

    # ---- In-kernel halo padding ------------------------------------------------
    # Data rows live at sublane-aligned offset H; the only rows the taps read
    # outside the data are H-1 and H+L, so zero exactly those every step (the
    # scratch persists across grid steps / cores, so no step-0-only init).
    xp_s[:, H - 1:H, :] = jnp.zeros((Bt, 1, Cin), cdt)
    xp_s[:, H + L:H + L + 1, :] = jnp.zeros((Bt, 1, Cin), cdt)
    xp_s[:, H:H + L, :] = x_ref[...].astype(cdt)

    def mm(a3, w2d):
        # a3: (Bt, L, C) tap slice loaded from a ref; fold batch*length into the
        # MXU M axis (free reshape when L % 8 == 0).
        a2 = a3.reshape(Bt * L, a3.shape[-1])
        return jnp.dot(a2, w2d, preferred_element_type=jnp.float32)

    # ---- Conv1 (k=3, pad=1): three accumulating matmuls over REF slices ---------
    g = (mm(xp_s[:, H - 1:H - 1 + L, :], w1_ref[0])
         + mm(xp_s[:, H:H + L, :], w1_ref[1])
         + mm(xp_s[:, H + 1:H + 1 + L, :], w1_ref[2]))
    g = jnp.maximum(g + sh1_ref[...], 0.0)              # BN1 scale already in weights

    g_s[:, H - 1:H, :] = jnp.zeros((Bt, 1, Cmid), cdt)
    g_s[:, H + L:H + L + 1, :] = jnp.zeros((Bt, 1, Cmid), cdt)
    g_s[:, H:H + L, :] = g.astype(cdt).reshape(Bt, L, Cmid)

    # ---- Conv2 (k=3, pad=1) ------------------------------------------------------
    h = (mm(g_s[:, H - 1:H - 1 + L, :], w2_ref[0])
         + mm(g_s[:, H:H + L, :], w2_ref[1])
         + mm(g_s[:, H + 1:H + 1 + L, :], w2_ref[2]))
    h = jnp.maximum(h + sh2_ref[...], 0.0).astype(cdt)  # (Bt*L, Cmid)

    # ---- ConvTranspose1d(k=2, s=2): both output phases in ONE matmul -------------
    o = jnp.dot(h, wt_ref[...], preferred_element_type=jnp.float32) + bt_ref[...]
    o_ref[...] = o.reshape(Bt, L, Cout2).astype(o_ref.dtype)


# ------------------------------- wrappers --------------------------------------
def _choose_bt(B, L, m_target=512, bt_cap=32):
    """Largest divisor of B (<= bt_cap) keeping Bt*L near the MXU M target."""
    cap = max(1, min(bt_cap, m_target // max(L, 1)))
    bt = 1
    for cand in range(1, min(B, cap) + 1):
        if B % cand == 0:
            bt = cand
    return bt


def _forward_nlc(x_nlc, w1f, sh1, w2f, sh2, wtf, btf, *, compute_dtype,
                 out_dtype, batch_block):
    """x_nlc: (B, L, Cin). Returns (B, 2*L, Cout) in channels-last layout."""
    B, L, Cin = x_nlc.shape
    Cmid = w1f.shape[-1]
    Cout2 = wtf.shape[-1]
    cdt = compute_dtype

    if batch_block is not None and B % batch_block == 0:
        Bt = batch_block
    else:
        Bt = _choose_bt(B, L)
    Lp = L + 2 * _HALO

    # Weights are tiny; cast to compute dtype here.  Shifts/bias stay f32.
    w1c, w2c, wtc = w1f.astype(cdt), w2f.astype(cdt), wtf.astype(cdt)
    sh1f, sh2f, btff = (v.astype(jnp.float32) for v in (sh1, sh2, btf))

    y = pl.pallas_call(
        _decoder_kernel,
        out_shape=jax.ShapeDtypeStruct((B, L, Cout2), out_dtype),
        grid_spec=pltpu.PrefetchScalarGridSpec(
            num_scalar_prefetch=0,
            grid=(B // Bt,),
            in_specs=[
                pl.BlockSpec((Bt, L, Cin), lambda b: (b, 0, 0)),
                pl.BlockSpec((3, Cin, Cmid), lambda b: (0, 0, 0)),
                pl.BlockSpec((1, Cmid), lambda b: (0, 0)),
                pl.BlockSpec((3, Cmid, Cmid), lambda b: (0, 0, 0)),
                pl.BlockSpec((1, Cmid), lambda b: (0, 0)),
                pl.BlockSpec((Cmid, Cout2), lambda b: (0, 0)),
                pl.BlockSpec((1, Cout2), lambda b: (0, 0)),
            ],
            out_specs=pl.BlockSpec((Bt, L, Cout2), lambda b: (b, 0, 0)),
            scratch_shapes=[
                pltpu.VMEM((Bt, Lp, Cin), cdt),
                pltpu.VMEM((Bt, Lp, Cmid), cdt),
            ],
        ),
        compiler_params=pltpu.CompilerParams(
            dimension_semantics=("parallel",)),
    )(x_nlc, w1c, sh1f, w2c, sh2f, wtc, btff)

    # (B, L, 2*Cout) -> (B, 2L, Cout): contiguous reshape (free, no interleave pass).
    return y.reshape(B, 2 * L, Cout2 // 2)


@functools.partial(jax.jit,
                   static_argnames=("compute_dtype", "out_dtype", "batch_block"))
def decoder_block_pallas_nlc(x_nlc, w1f, sh1, w2f, sh2, wtf, btf,
                             compute_dtype=jnp.bfloat16, out_dtype=jnp.float32,
                             batch_block=None):
    return _forward_nlc(x_nlc, w1f, sh1, w2f, sh2, wtf, btf,
                        compute_dtype=compute_dtype, out_dtype=out_dtype,
                        batch_block=batch_block)


@functools.partial(jax.jit,
                   static_argnames=("compute_dtype", "out_dtype", "batch_block"))
def decoder_block_pallas_ncl(x_ncl, w1f, sh1, w2f, sh2, wtf, btf,
                             compute_dtype=jnp.bfloat16, out_dtype=jnp.float32,
                             batch_block=None):
    """PyTorch-interface wrapper: x (B, Cin, L) -> (B, Cout, 2L).
    The two transposes exist only to match the NCL interface; keep the
    surrounding model in NLC (use decoder_block_pallas_nlc) to avoid them."""
    x_nlc = jnp.transpose(x_ncl, (0, 2, 1))
    y_nlc = _forward_nlc(x_nlc, w1f, sh1, w2f, sh2, wtf, btf,
                         compute_dtype=compute_dtype, out_dtype=out_dtype,
                         batch_block=batch_block)
    return jnp.transpose(y_nlc, (0, 2, 1))


def pack_params(p, eps=1e-5):
    """Repack PyTorch-shaped parameters; fold eval-mode BN scale INTO the conv
    weights (only the shift stays as an in-kernel add)."""
    Cmid, Cin, _ = p['w1'].shape
    Cout = p['wt'].shape[1]
    s1 = p['g1'] / jnp.sqrt(p['v1'] + eps)
    sh1 = p['be1'] + (p['b1'] - p['m1']) * s1
    s2 = p['g2'] / jnp.sqrt(p['v2'] + eps)
    sh2 = p['be2'] + (p['b2'] - p['m2']) * s2
    # Conv weights (Co, Ci, 3) -> (3, Ci, Co), BN scale folded into output columns.
    w1f = jnp.transpose(p['w1'], (2, 1, 0)) * s1[None, None, :]
    w2f = jnp.transpose(p['w2'], (2, 1, 0)) * s2[None, None, :]
    # ConvTranspose weight (Ci, Co, 2) -> (Ci, 2, Co) -> (Ci, 2*Co); col = k*Co + o.
    wtf = jnp.transpose(p['wt'], (0, 2, 1)).reshape(Cmid, 2 * Cout)
    btf = jnp.tile(p['bt'], (2,))
    return (w1f, sh1.reshape(1, Cmid), w2f, sh2.reshape(1, Cmid),
            wtf, btf.reshape(1, 2 * Cout))


# --------------------------- plain-JAX reference -------------------------------
def _reference(x_ncl, p):
    B, Cin, L = x_ncl.shape
    eps = 1e-5

    def conv1d(x, w, b):  # x (B,Ci,L), w (Co,Ci,3)
        xp = jnp.pad(x, ((0, 0), (0, 0), (1, 1)))
        out = b[None, :, None]
        for k in range(3):
            out = out + jnp.einsum('bil,oi->bol', xp[:, :, k:k + L], w[:, :, k])
        return out

    def bn(x, g, be, m, v):
        return (x - m[None, :, None]) / jnp.sqrt(v[None, :, None] + eps) \
            * g[None, :, None] + be[None, :, None]

    h = jax.nn.relu(bn(conv1d(x_ncl, p['w1'], p['b1']), p['g1'], p['be1'], p['m1'], p['v1']))
    h = jax.nn.relu(bn(conv1d(h, p['w2'], p['b2']), p['g2'], p['be2'], p['m2'], p['v2']))
    # ConvTranspose1d(kernel=2, stride=2): w (Ci, Co, 2)
    y = jnp.einsum('bil,iok->bolk', h, p['wt'])            # (B, Co, L, 2)
    y = y.reshape(B, p['wt'].shape[1], 2 * L) + p['bt'][None, :, None]
    return y


# ---------------------------------- main ---------------------------------------
if __name__ == "__main__":
    B, Cin, Cmid, Cout, L = 8, 4, 8, 4, 16

    key = jax.random.PRNGKey(0)
    ks = jax.random.split(key, 8)

    # Deterministic synthetic parameters (PyTorch-shaped, eval-mode BN statistics).
    # TODO(synk): training-mode BatchNorm (batch statistics) is not implemented;
    # BN is folded in eval mode (running stats), matching inference use.
    p = {
        'w1': jax.random.normal(ks[0], (Cmid, Cin, 3), jnp.float32) * 0.2,
        'b1': jax.random.normal(ks[1], (Cmid,), jnp.float32) * 0.1,
        'g1': 1.0 + 0.01 * jnp.arange(Cmid, dtype=jnp.float32),
        'be1': 0.02 * jnp.arange(Cmid, dtype=jnp.float32),
        'm1': 0.05 * jnp.arange(Cmid, dtype=jnp.float32),
        'v1': 1.0 + 0.03 * jnp.arange(Cmid, dtype=jnp.float32),
        'w2': jax.random.normal(ks[2], (Cmid, Cmid, 3), jnp.float32) * 0.2,
        'b2': jax.random.normal(ks[3], (Cmid,), jnp.float32) * 0.1,
        'g2': 1.0 - 0.01 * jnp.arange(Cmid, dtype=jnp.float32),
        'be2': -0.02 * jnp.arange(Cmid, dtype=jnp.float32),
        'm2': 0.04 * jnp.arange(Cmid, dtype=jnp.float32),
        'v2': 1.0 + 0.02 * jnp.arange(Cmid, dtype=jnp.float32),
        'wt': jax.random.normal(ks[4], (Cmid, Cout, 2), jnp.float32) * 0.2,
        'bt': jax.random.normal(ks[5], (Cout,), jnp.float32) * 0.1,
    }
    packed = pack_params(p)

    # Input in PyTorch NCL layout.
    x = jax.random.normal(ks[6], (B, Cin, L), jnp.float32)
    ref = _reference(x, p)

    # --- f32 compute path (single batch block, grid=(1,)) ---
    # Tolerance covers the MXU's default f32-matmul precision (bf16 multi-pass).
    out_f32 = decoder_block_pallas_ncl(x, *packed, compute_dtype=jnp.float32)
    out_f32 = jax.block_until_ready(out_f32)
    assert out_f32.shape == (B, Cout, 2 * L), out_f32.shape
    assert jnp.allclose(out_f32, ref, atol=2e-3, rtol=2e-3), \
        f"f32 max abs err = {jnp.max(jnp.abs(out_f32 - ref))}"

    # --- bf16 compute path (default; activations/weights bf16, f32 accumulation) ---
    out_bf16 = decoder_block_pallas_ncl(x, *packed, compute_dtype=jnp.bfloat16)
    out_bf16 = jax.block_until_ready(out_bf16)
    assert jnp.allclose(out_bf16, ref, atol=5e-2, rtol=5e-2), \
        f"bf16 max abs err = {jnp.max(jnp.abs(out_bf16 - ref))}"

    # --- multi-step grid path (batch_block=2 -> grid=(4,), exercises pipelining
    #     and the 'parallel' megacore split) ---
    out_blk = decoder_block_pallas_ncl(x, *packed, compute_dtype=jnp.float32,
                                       batch_block=2)
    out_blk = jax.block_until_ready(out_blk)
    assert jnp.allclose(out_blk, ref, atol=2e-3, rtol=2e-3), \
        f"blocked max abs err = {jnp.max(jnp.abs(out_blk - ref))}"

    print("KERNEL_OK")
</pallas_src>

<mosaic_0001>
module attributes {stable_mosaic.version = 11 : i64} {
  func.func @_decoder_kernel(%arg0: i32, %arg1: memref<8x16x4xf32, #tpu.memory_space<vmem>>, %arg2: memref<3x4x8xf32, #tpu.memory_space<vmem>>, %arg3: memref<1x8xf32, #tpu.memory_space<vmem>>, %arg4: memref<3x8x8xf32, #tpu.memory_space<vmem>>, %arg5: memref<1x8xf32, #tpu.memory_space<vmem>>, %arg6: memref<8x8xf32, #tpu.memory_space<vmem>>, %arg7: memref<1x8xf32, #tpu.memory_space<vmem>>, %arg8: memref<8x16x8xf32, #tpu.memory_space<vmem>>, %arg9: memref<8x32x4xf32, #tpu.memory_space<vmem>>, %arg10: memref<8x32x8xf32, #tpu.memory_space<vmem>>) attributes {dimension_semantics = [#tpu.dimension_semantics<parallel>], iteration_bounds = array<i64: 1>, scalar_prefetch = 0 : i64, scratch_operands = 2 : i64, tpu.core_type = #tpu.core_type<tc>, window_params = [{transform_indices = @transform_0, window_bounds = array<i64: 8, 16, 4>}, {pipeline_mode = #tpu.pipeline_mode<synchronous>, transform_indices = @transform_1, window_bounds = array<i64: 3, 4, 8>}, {pipeline_mode = #tpu.pipeline_mode<synchronous>, transform_indices = @transform_2, window_bounds = array<i64: 1, 8>}, {pipeline_mode = #tpu.pipeline_mode<synchronous>, transform_indices = @transform_3, window_bounds = array<i64: 3, 8, 8>}, {pipeline_mode = #tpu.pipeline_mode<synchronous>, transform_indices = @transform_4, window_bounds = array<i64: 1, 8>}, {pipeline_mode = #tpu.pipeline_mode<synchronous>, transform_indices = @transform_5, window_bounds = array<i64: 8, 8>}, {pipeline_mode = #tpu.pipeline_mode<synchronous>, transform_indices = @transform_6, window_bounds = array<i64: 1, 8>}, {transform_indices = @transform_7, window_bounds = array<i64: 8, 16, 8>}]} {
    %cst = arith.constant 0.000000e+00 : f32
    %0 = vector.broadcast %cst : f32 to vector<8x1x4xf32>
    %c0 = arith.constant 0 : index
    %c7 = arith.constant 7 : index
    %c0_0 = arith.constant 0 : index
    %1 = vector.load %arg9[%c0, %c7, %c0_0] : memref<8x32x4xf32, #tpu.memory_space<vmem>>, vector<8x1x4xf32>
    tpu.vector_store %arg9[%c0, %c7, %c0_0], %0 {strides = array<i32>} : memref<8x32x4xf32, #tpu.memory_space<vmem>>, vector<8x1x4xf32>,
    %cst_1 = arith.constant 0.000000e+00 : f32
    %2 = vector.broadcast %cst_1 : f32 to vector<8x1x4xf32>
    %c0_2 = arith.constant 0 : index
    %c24 = arith.constant 24 : index
    %c0_3 = arith.constant 0 : index
    %3 = vector.load %arg9[%c0_2, %c24, %c0_3] : memref<8x32x4xf32, #tpu.memory_space<vmem>>, vector<8x1x4xf32>
    tpu.vector_store %arg9[%c0_2, %c24, %c0_3], %2 {strides = array<i32>} : memref<8x32x4xf32, #tpu.memory_space<vmem>>, vector<8x1x4xf32>,
    %c0_4 = arith.constant 0 : index
    %c0_5 = arith.constant 0 : index
    %c0_6 = arith.constant 0 : index
    %4 = vector.load %arg1[%c0_4, %c0_5, %c0_6] : memref<8x16x4xf32, #tpu.memory_space<vmem>>, vector<8x16x4xf32>
    %c0_7 = arith.constant 0 : index
    %c8 = arith.constant 8 : index
    %c0_8 = arith.constant 0 : index
    %5 = vector.load %arg9[%c0_7, %c8, %c0_8] : memref<8x32x4xf32, #tpu.memory_space<vmem>>, vector<8x16x4xf32>
    tpu.vector_store %arg9[%c0_7, %c8, %c0_8], %4 {strides = array<i32>} : memref<8x32x4xf32, #tpu.memory_space<vmem>>, vector<8x16x4xf32>,
    %c0_9 = arith.constant 0 : index
    %c7_10 = arith.constant 7 : index
    %c0_11 = arith.constant 0 : index
    %6 = vector.load %arg9[%c0_9, %c7_10, %c0_11] : memref<8x32x4xf32, #tpu.memory_space<vmem>>, vector<8x16x4xf32>
    %c0_12 = arith.constant 0 : index
    %c0_13 = arith.constant 0 : index
    %c0_14 = arith.constant 0 : index
    %7 = vector.load %arg2[%c0_12, %c0_13, %c0_14] : memref<3x4x8xf32, #tpu.memory_space<vmem>>, vector<1x4x8xf32>
    %8 = vector.shape_cast %7 : vector<1x4x8xf32> to vector<4x8xf32>
    %9 = vector.shape_cast %6 : vector<8x16x4xf32> to vector<128x4xf32>
    %cst_15 = arith.constant dense<0.000000e+00> : vector<128x8xf32>
    %10 = tpu.matmul %9, %8, %cst_15 {dimension_numbers = #tpu.dot_dimension_numbers<[1], [0], [0], [1], [0, 0, 1, 1], [], []>} : vector<128x4xf32>, vector<4x8xf32>, vector<128x8xf32> -> vector<128x8xf32>
    %c0_16 = arith.constant 0 : index
    %c8_17 = arith.constant 8 : index
    %c0_18 = arith.constant 0 : index
    %11 = vector.load %arg9[%c0_16, %c8_17, %c0_18] : memref<8x32x4xf32, #tpu.memory_space<vmem>>, vector<8x16x4xf32>
    %c1 = arith.constant 1 : index
    %c0_19 = arith.constant 0 : index
    %c0_20 = arith.constant 0 : index
    %12 = vector.load %arg2[%c1, %c0_19, %c0_20] : memref<3x4x8xf32, #tpu.memory_space<vmem>>, vector<1x4x8xf32>
    %13 = vector.shape_cast %12 : vector<1x4x8xf32> to vector<4x8xf32>
    %14 = vector.shape_cast %11 : vector<8x16x4xf32> to vector<128x4xf32>
    %cst_21 = arith.constant dense<0.000000e+00> : vector<128x8xf32>
    %15 = tpu.matmul %14, %13, %cst_21 {dimension_numbers = #tpu.dot_dimension_numbers<[1], [0], [0], [1], [0, 0, 1, 1], [], []>} : vector<128x4xf32>, vector<4x8xf32>, vector<128x8xf32> -> vector<128x8xf32>
    %16 = arith.addf %10, %15 : vector<128x8xf32>
    %c0_22 = arith.constant 0 : index
    %c9 = arith.constant 9 : index
    %c0_23 = arith.constant 0 : index
    %17 = vector.load %arg9[%c0_22, %c9, %c0_23] : memref<8x32x4xf32, #tpu.memory_space<vmem>>, vector<8x16x4xf32>
    %c2 = arith.constant 2 : index
    %c0_24 = arith.constant 0 : index
    %c0_25 = arith.constant 0 : index
    %18 = vector.load %arg2[%c2, %c0_24, %c0_25] : memref<3x4x8xf32, #tpu.memory_space<vmem>>, vector<1x4x8xf32>
    %19 = vector.shape_cast %18 : vector<1x4x8xf32> to vector<4x8xf32>
    %20 = vector.shape_cast %17 : vector<8x16x4xf32> to vector<128x4xf32>
    %cst_26 = arith.constant dense<0.000000e+00> : vector<128x8xf32>
    %21 = tpu.matmul %20, %19, %cst_26 {dimension_numbers = #tpu.dot_dimension_numbers<[1], [0], [0], [1], [0, 0, 1, 1], [], []>} : vector<128x4xf32>, vector<4x8xf32>, vector<128x8xf32> -> vector<128x8xf32>
    %22 = arith.addf %16, %21 : vector<128x8xf32>
    %c0_27 = arith.constant 0 : index
    %c0_28 = arith.constant 0 : index
    %23 = vector.load %arg3[%c0_27, %c0_28] : memref<1x8xf32, #tpu.memory_space<vmem>>, vector<1x8xf32>
    %24 = vector.broadcast %23 : vector<1x8xf32> to vector<128x8xf32>
    %25 = arith.addf %22, %24 : vector<128x8xf32>
    %cst_29 = arith.constant 0.000000e+00 : f32
    %26 = vector.broadcast %cst_29 : f32 to vector<128x8xf32>
    %27 = arith.maximumf %25, %26 : vector<128x8xf32>
    %cst_30 = arith.constant 0.000000e+00 : f32
    %28 = vector.broadcast %cst_30 : f32 to vector<8x1x8xf32>
    %c0_31 = arith.constant 0 : index
    %c7_32 = arith.constant 7 : index
    %c0_33 = arith.constant 0 : index
    %29 = vector.load %arg10[%c0_31, %c7_32, %c0_33] : memref<8x32x8xf32, #tpu.memory_space<vmem>>, vector<8x1x8xf32>
    tpu.vector_store %arg10[%c0_31, %c7_32, %c0_33], %28 {strides = array<i32>} : memref<8x32x8xf32, #tpu.memory_space<vmem>>, vector<8x1x8xf32>,
    %cst_34 = arith.constant 0.000000e+00 : f32
    %30 = vector.broadcast %cst_34 : f32 to vector<8x1x8xf32>
    %c0_35 = arith.constant 0 : index
    %c24_36 = arith.constant 24 : index
    %c0_37 = arith.constant 0 : index
    %31 = vector.load %arg10[%c0_35, %c24_36, %c0_37] : memref<8x32x8xf32, #tpu.memory_space<vmem>>, vector<8x1x8xf32>
    tpu.vector_store %arg10[%c0_35, %c24_36, %c0_37], %30 {strides = array<i32>} : memref<8x32x8xf32, #tpu.memory_space<vmem>>, vector<8x1x8xf32>,
    %32 = vector.shape_cast %27 : vector<128x8xf32> to vector<8x16x8xf32>
    %c0_38 = arith.constant 0 : index
    %c8_39 = arith.constant 8 : index
    %c0_40 = arith.constant 0 : index
    %33 = vector.load %arg10[%c0_38, %c8_39, %c0_40] : memref<8x32x8xf32, #tpu.memory_space<vmem>>, vector<8x16x8xf32>
    tpu.vector_store %arg10[%c0_38, %c8_39, %c0_40], %32 {strides = array<i32>} : memref<8x32x8xf32, #tpu.memory_space<vmem>>, vector<8x16x8xf32>,
    %c0_41 = arith.constant 0 : index
    %c7_42 = arith.constant 7 : index
    %c0_43 = arith.constant 0 : index
    %34 = vector.load %arg10[%c0_41, %c7_42, %c0_43] : memref<8x32x8xf32, #tpu.memory_space<vmem>>, vector<8x16x8xf32>
    %c0_44 = arith.constant 0 : index
    %c0_45 = arith.constant 0 : index
    %c0_46 = arith.constant 0 : index
    %35 = vector.load %arg4[%c0_44, %c0_45, %c0_46] : memref<3x8x8xf32, #tpu.memory_space<vmem>>, vector<1x8x8xf32>
    %36 = vector.shape_cast %35 : vector<1x8x8xf32> to vector<8x8xf32>
    %37 = vector.shape_cast %34 : vector<8x16x8xf32> to vector<128x8xf32>
    %cst_47 = arith.constant dense<0.000000e+00> : vector<128x8xf32>
    %38 = tpu.matmul %37, %36, %cst_47 {dimension_numbers = #tpu.dot_dimension_numbers<[1], [0], [0], [1], [0, 0, 1, 1], [], []>} : vector<128x8xf32>, vector<8x8xf32>, vector<128x8xf32> -> vector<128x8xf32>
    %c0_48 = arith.constant 0 : index
    %c8_49 = arith.constant 8 : index
    %c0_50 = arith.constant 0 : index
    %39 = vector.load %arg10[%c0_48, %c8_49, %c0_50] : memref<8x32x8xf32, #tpu.memory_space<vmem>>, vector<8x16x8xf32>
    %c1_51 = arith.constant 1 : index
    %c0_52 = arith.constant 0 : index
    %c0_53 = arith.constant 0 : index
    %40 = vector.load %arg4[%c1_51, %c0_52, %c0_53] : memref<3x8x8xf32, #tpu.memory_space<vmem>>, vector<1x8x8xf32>
    %41 = vector.shape_cast %40 : vector<1x8x8xf32> to vector<8x8xf32>
    %42 = vector.shape_cast %39 : vector<8x16x8xf32> to vector<128x8xf32>
    %cst_54 = arith.constant dense<0.000000e+00> : vector<128x8xf32>
    %43 = tpu.matmul %42, %41, %cst_54 {dimension_numbers = #tpu.dot_dimension_numbers<[1], [0], [0], [1], [0, 0, 1, 1], [], []>} : vector<128x8xf32>, vector<8x8xf32>, vector<128x8xf32> -> vector<128x8xf32>
    %44 = arith.addf %38, %43 : vector<128x8xf32>
    %c0_55 = arith.constant 0 : index
    %c9_56 = arith.constant 9 : index
    %c0_57 = arith.constant 0 : index
    %45 = vector.load %arg10[%c0_55, %c9_56, %c0_57] : memref<8x32x8xf32, #tpu.memory_space<vmem>>, vector<8x16x8xf32>
    %c2_58 = arith.constant 2 : index
    %c0_59 = arith.constant 0 : index
    %c0_60 = arith.constant 0 : index
    %46 = vector.load %arg4[%c2_58, %c0_59, %c0_60] : memref<3x8x8xf32, #tpu.memory_space<vmem>>, vector<1x8x8xf32>
    %47 = vector.shape_cast %46 : vector<1x8x8xf32> to vector<8x8xf32>
    %48 = vector.shape_cast %45 : vector<8x16x8xf32> to vector<128x8xf32>
    %cst_61 = arith.constant dense<0.000000e+00> : vector<128x8xf32>
    %49 = tpu.matmul %48, %47, %cst_61 {dimension_numbers = #tpu.dot_dimension_numbers<[1], [0], [0], [1], [0, 0, 1, 1], [], []>} : vector<128x8xf32>, vector<8x8xf32>, vector<128x8xf32> -> vector<128x8xf32>
    %50 = arith.addf %44, %49 : vector<128x8xf32>
    %c0_62 = arith.constant 0 : index
    %c0_63 = arith.constant 0 : index
    %51 = vector.load %arg5[%c0_62, %c0_63] : memref<1x8xf32, #tpu.memory_space<vmem>>, vector<1x8xf32>
    %52 = vector.broadcast %51 : vector<1x8xf32> to vector<128x8xf32>
    %53 = arith.addf %50, %52 : vector<128x8xf32>
    %cst_64 = arith.constant 0.000000e+00 : f32
    %54 = vector.broadcast %cst_64 : f32 to vector<128x8xf32>
    %55 = arith.maximumf %53, %54 : vector<128x8xf32>
    %c0_65 = arith.constant 0 : index
    %c0_66 = arith.constant 0 : index
    %56 = vector.load %arg6[%c0_65, %c0_66] : memref<8x8xf32, #tpu.memory_space<vmem>>, vector<8x8xf32>
    %cst_67 = arith.constant dense<0.000000e+00> : vector<128x8xf32>
    %57 = tpu.matmul %55, %56, %cst_67 {dimension_numbers = #tpu.dot_dimension_numbers<[1], [0], [0], [1], [0, 0, 1, 1], [], []>} : vector<128x8xf32>, vector<8x8xf32>, vector<128x8xf32> -> vector<128x8xf32>
    %c0_68 = arith.constant 0 : index
    %c0_69 = arith.constant 0 : index
    %58 = vector.load %arg7[%c0_68, %c0_69] : memref<1x8xf32, #tpu.memory_space<vmem>>, vector<1x8xf32>
    %59 = vector.broadcast %58 : vector<1x8xf32> to vector<128x8xf32>
    %60 = arith.addf %57, %59 : vector<128x8xf32>
    %61 = vector.shape_cast %60 : vector<128x8xf32> to vector<8x16x8xf32>
    %c0_70 = arith.constant 0 : index
    %c0_71 = arith.constant 0 : index
    %c0_72 = arith.constant 0 : index
    %62 = vector.load %arg8[%c0_70, %c0_71, %c0_72] : memref<8x16x8xf32, #tpu.memory_space<vmem>>, vector<8x16x8xf32>
    tpu.vector_store %arg8[%c0_70, %c0_71, %c0_72], %61 {strides = array<i32>} : memref<8x16x8xf32, #tpu.memory_space<vmem>>, vector<8x16x8xf32>,
    return
  }
  func.func @transform_0(%arg0: i32) -> (i32, i32, i32) {
    %c0_i32 = arith.constant 0 : i32
    %c0_i32_0 = arith.constant 0 : i32
    %c0_i32_1 = arith.constant 0 : i32
    return %arg0, %c0_i32, %c0_i32_0 : i32, i32, i32
  }
  func.func @transform_1(%arg0: i32) -> (i32, i32, i32) {
    %c0_i32 = arith.constant 0 : i32
    %c0_i32_0 = arith.constant 0 : i32
    %c0_i32_1 = arith.constant 0 : i32
    %c0_i32_2 = arith.constant 0 : i32
    return %c0_i32, %c0_i32_0, %c0_i32_1 : i32, i32, i32
  }
  func.func @transform_2(%arg0: i32) -> (i32, i32) {
    %c0_i32 = arith.constant 0 : i32
    %c0_i32_0 = arith.constant 0 : i32
    %c0_i32_1 = arith.constant 0 : i32
    return %c0_i32, %c0_i32_0 : i32, i32
  }
  func.func @transform_3(%arg0: i32) -> (i32, i32, i32) {
    %c0_i32 = arith.constant 0 : i32
    %c0_i32_0 = arith.constant 0 : i32
    %c0_i32_1 = arith.constant 0 : i32
    %c0_i32_2 = arith.constant 0 : i32
    return %c0_i32, %c0_i32_0, %c0_i32_1 : i32, i32, i32
  }
  func.func @transform_4(%arg0: i32) -> (i32, i32) {
    %c0_i32 = arith.constant 0 : i32
    %c0_i32_0 = arith.constant 0 : i32
    %c0_i32_1 = arith.constant 0 : i32
    return %c0_i32, %c0_i32_0 : i32, i32
  }
  func.func @transform_5(%arg0: i32) -> (i32, i32) {
    %c0_i32 = arith.constant 0 : i32
    %c0_i32_0 = arith.constant 0 : i32
    %c0_i32_1 = arith.constant 0 : i32
    return %c0_i32, %c0_i32_0 : i32, i32
  }
  func.func @transform_6(%arg0: i32) -> (i32, i32) {
    %c0_i32 = arith.constant 0 : i32
    %c0_i32_0 = arith.constant 0 : i32
    %c0_i32_1 = arith.constant 0 : i32
    return %c0_i32, %c0_i32_0 : i32, i32
  }
  func.func @transform_7(%arg0: i32) -> (i32, i32, i32) {
    %c0_i32 = arith.constant 0 : i32
    %c0_i32_0 = arith.constant 0 : i32
    %c0_i32_1 = arith.constant 0 : i32
    return %arg0, %c0_i32, %c0_i32_0 : i32, i32, i32
  }
}

</mosaic_0001>

<llo_original>
// kernel: decoder_block_pallas_ncl.1
$region0: #{decoder_block_pallas_ncl.1}
  #allocation0 [shape = 'u32[]', space=smem, size = 0x4, offset = 0x4, fixed_abs, tag = 'smem constant byte address 0x4 - core index']
  #allocation1 [shape = 'u32[144,128]{1,0:T(1,128)}', space=vmem, size = 0x12000, scoped, tag = 'internal scratch']
  #allocation2 [shape = 'f32[8,32,4]{2,1,0:T(8,128)}', space=vmem, size = 0x20000, scoped, tag = 'scratch operand']
  #allocation3 [shape = 'f32[8,32,8]{2,1,0:T(8,128)}', space=vmem, size = 0x20000, scoped, tag = 'scratch operand']
  %s0 = inlined_call_operand.vmem [shape: f32[8,16,4], index: 0, kind: input, shape index: {}]
  %s1 = inlined_call_operand.vmem [shape: f32[3,4,8], index: 1, kind: input, shape index: {}]
  %s2 = inlined_call_operand.vmem [shape: f32[1,8], index: 2, kind: input, shape index: {}]
  %s3 = inlined_call_operand.vmem [shape: f32[3,8,8], index: 3, kind: input, shape index: {}]
  %s4 = inlined_call_operand.vmem [shape: f32[1,8], index: 4, kind: input, shape index: {}]
  %s5 = inlined_call_operand.vmem [shape: f32[8,8], index: 5, kind: input, shape index: {}]
  %s6 = inlined_call_operand.vmem [shape: f32[1,8], index: 6, kind: input, shape index: {}]
  %s7 = inlined_call_operand.vmem [shape: f32[8,16,8], index: 7, kind: output, shape index: {}]
  %s8 = sld [smem:[#allocation0]]
  $region38: #{decoder_block_pallas_ncl.1} parent=0
    _
  %s10 = ssub.s32 1, %s8
  %s11 = scalar_select 0, %s10, %s8
  // Predicated region
  $region2: #{decoder_block_pallas_ncl.1} parent=0 // pred_check
    _
  $region3: #{decoder_block_pallas_ncl.1} parent=0 // pred_check_branch
    %13 = sbr.rel (0) target = $region5
  $region4: #{decoder_block_pallas_ncl.1} parent=0 // pred_region
    _
  $region5: #{decoder_block_pallas_ncl.1} parent=0 // pred_fallthru
    _
  // Predicated region
  $region6: #{decoder_block_pallas_ncl.1} parent=0 // pred_check
    _
  $region7: #{decoder_block_pallas_ncl.1} parent=0 // pred_check_branch
    %15 = sbr.rel (0) target = $region9
  $region8: #{decoder_block_pallas_ncl.1} parent=0 // pred_region
    _
  $region9: #{decoder_block_pallas_ncl.1} parent=0 // pred_fallthru
    _
  // Predicated region
  $region10: #{decoder_block_pallas_ncl.1} parent=0 // pred_check
    _
  $region11: #{decoder_block_pallas_ncl.1} parent=0 // pred_check_branch
    %17 = sbr.rel (0) target = $region13
  $region12: #{decoder_block_pallas_ncl.1} parent=0 // pred_region
    _
  $region13: #{decoder_block_pallas_ncl.1} parent=0 // pred_fallthru
    _
  // Predicated region
  $region14: #{decoder_block_pallas_ncl.1} parent=0 // pred_check
    _
  $region15: #{decoder_block_pallas_ncl.1} parent=0 // pred_check_branch
    %19 = sbr.rel (0) target = $region17
  $region16: #{decoder_block_pallas_ncl.1} parent=0 // pred_region
    _
  $region17: #{decoder_block_pallas_ncl.1} parent=0 // pred_fallthru
    _
  // Predicated region
  $region18: #{decoder_block_pallas_ncl.1} parent=0 // pred_check
    _
  $region19: #{decoder_block_pallas_ncl.1} parent=0 // pred_check_branch
    %21 = sbr.rel (0) target = $region21
  $region20: #{decoder_block_pallas_ncl.1} parent=0 // pred_region
    _
  $region21: #{decoder_block_pallas_ncl.1} parent=0 // pred_fallthru
    _
  // Predicated region
  $region22: #{decoder_block_pallas_ncl.1} parent=0 // pred_check
    _
  $region23: #{decoder_block_pallas_ncl.1} parent=0 // pred_check_branch
    %23 = sbr.rel (0) target = $region25
  $region24: #{decoder_block_pallas_ncl.1} parent=0 // pred_region
    _
  $region25: #{decoder_block_pallas_ncl.1} parent=0 // pred_fallthru
    _
  // Predicated region
  $region26: #{decoder_block_pallas_ncl.1} parent=0 // pred_check
    _
  $region27: #{decoder_block_pallas_ncl.1} parent=0 // pred_check_branch
    %25 = sbr.rel (0) target = $region29
  $region28: #{decoder_block_pallas_ncl.1} parent=0 // pred_region
    _
  $region29: #{decoder_block_pallas_ncl.1} parent=0 // pred_fallthru
    _
  %vm26 = vcmask 24576
  %27 = vst.msk [vmem:[#allocation2 + $0x7] sm:$0x1] %vm26, 0.0
  %28 = vst.msk [vmem:[#allocation2 + $0x27] sm:$0x1] %vm26, 0.0
  %29 = vst.msk [vmem:[#allocation2 + $0x47] sm:$0x1] %vm26, 0.0
  %30 = vst.msk [vmem:[#allocation2 + $0x67] sm:$0x1] %vm26, 0.0
  %31 = vst.msk [vmem:[#allocation2 + $0x87] sm:$0x1] %vm26, 0.0
  %32 = vst.msk [vmem:[#allocation2 + $0xa7] sm:$0x1] %vm26, 0.0
  %33 = vst.msk [vmem:[#allocation2 + $0xc7] sm:$0x1] %vm26, 0.0
  %34 = vst.msk [vmem:[#allocation2 + $0xe7] sm:$0x1] %vm26, 0.0
  %35 = vst.msk [vmem:[#allocation2 + $0x18] sm:$0x1] %vm26, 0.0
  %36 = vst.msk [vmem:[#allocation2 + $0x38] sm:$0x1] %vm26, 0.0
  %37 = vst.msk [vmem:[#allocation2 + $0x58] sm:$0x1] %vm26, 0.0
  %38 = vst.msk [vmem:[#allocation2 + $0x78] sm:$0x1] %vm26, 0.0
  %39 = vst.msk [vmem:[#allocation2 + $0x98] sm:$0x1] %vm26, 0.0
  %40 = vst.msk [vmem:[#allocation2 + $0xb8] sm:$0x1] %vm26, 0.0
  %41 = vst.msk [vmem:[#allocation2 + $0xd8] sm:$0x1] %vm26, 0.0
  %42 = vst.msk [vmem:[#allocation2 + $0xf8] sm:$0x1] %vm26, 0.0
  %v43 = vld [vmem:[%s0] sm:$0xff]
  %v44 = vld [vmem:[%s0 + $0x8] sm:$0xff]
  %v45 = vld [vmem:[%s0 + $0x10] sm:$0xff]
  %v46 = vld [vmem:[%s0 + $0x18] sm:$0xff]
  %v47 = vld [vmem:[%s0 + $0x20] sm:$0xff]
  %v48 = vld [vmem:[%s0 + $0x28] sm:$0xff]
  %v49 = vld [vmem:[%s0 + $0x30] sm:$0xff]
  %v50 = vld [vmem:[%s0 + $0x38] sm:$0xff]
  %v51 = vld [vmem:[%s0 + $0x40] sm:$0xff]
  %v52 = vld [vmem:[%s0 + $0x48] sm:$0xff]
  %v53 = vld [vmem:[%s0 + $0x50] sm:$0xff]
  %v54 = vld [vmem:[%s0 + $0x58] sm:$0xff]
  %v55 = vld [vmem:[%s0 + $0x60] sm:$0xff]
  %v56 = vld [vmem:[%s0 + $0x68] sm:$0xff]
  %v57 = vld [vmem:[%s0 + $0x70] sm:$0xff]
  %v58 = vld [vmem:[%s0 + $0x78] sm:$0xff]
  %vm59 = vcmask 31744
  %60 = vst.msk [vmem:[#allocation2 + $0x8] sm:$0xff] %vm59, %v43
  %61 = vst.msk [vmem:[#allocation2 + $0x10] sm:$0xff] %vm59, %v44
  %62 = vst.msk [vmem:[#allocation2 + $0x28] sm:$0xff] %vm59, %v45
  %63 = vst.msk [vmem:[#allocation2 + $0x30] sm:$0xff] %vm59, %v46
  %64 = vst.msk [vmem:[#allocation2 + $0x48] sm:$0xff] %vm59, %v47
  %65 = vst.msk [vmem:[#allocation2 + $0x50] sm:$0xff] %vm59, %v48
  %66 = vst.msk [vmem:[#allocation2 + $0x68] sm:$0xff] %vm59, %v49
  %67 = vst.msk [vmem:[#allocation2 + $0x70] sm:$0xff] %vm59, %v50
  %68 = vst.msk [vmem:[#allocation2 + $0x88] sm:$0xff] %vm59, %v51
  %69 = vst.msk [vmem:[#allocation2 + $0x90] sm:$0xff] %vm59, %v52
  %70 = vst.msk [vmem:[#allocation2 + $0xa8] sm:$0xff] %vm59, %v53
  %71 = vst.msk [vmem:[#allocation2 + $0xb0] sm:$0xff] %vm59, %v54
  %72 = vst.msk [vmem:[#allocation2 + $0xc8] sm:$0xff] %vm59, %v55
  %73 = vst.msk [vmem:[#allocation2 + $0xd0] sm:$0xff] %vm59, %v56
  %74 = vst.msk [vmem:[#allocation2 + $0xe8] sm:$0xff] %vm59, %v57
  %75 = vst.msk [vmem:[#allocation2 + $0xf0] sm:$0xff] %vm59, %v58
  %v76 = vld [vmem:[#allocation2 + $0x7] sm:$0xff]
  %v77 = vld [vmem:[#allocation2 + $0xf] sm:$0xff]
  %v78 = vld [vmem:[#allocation2 + $0x27] sm:$0xff]
  %v79 = vld [vmem:[#allocation2 + $0x2f] sm:$0xff]
  %v80 = vld [vmem:[#allocation2 + $0x47] sm:$0xff]
  %v81 = vld [vmem:[#allocation2 + $0x4f] sm:$0xff]
  %v82 = vld [vmem:[#allocation2 + $0x67] sm:$0xff]
  %v83 = vld [vmem:[#allocation2 + $0x6f] sm:$0xff]
  %v84 = vld [vmem:[#allocation2 + $0x87] sm:$0xff]
  %v85 = vld [vmem:[#allocation2 + $0x8f] sm:$0xff]
  %v86 = vld [vmem:[#allocation2 + $0xa7] sm:$0xff]
  %v87 = vld [vmem:[#allocation2 + $0xaf] sm:$0xff]
  %v88 = vld [vmem:[#allocation2 + $0xc7] sm:$0xff]
  %v89 = vld [vmem:[#allocation2 + $0xcf] sm:$0xff]
  %v90 = vld [vmem:[#allocation2 + $0xe7] sm:$0xff]
  %v91 = vld [vmem:[#allocation2 + $0xef] sm:$0xff]
  %v92 = vld [vmem:[%s1] sm:$0xf]
  %v93 = vld [vmem:[#allocation2 + $0x8] sm:$0xff]
  %v94 = vld [vmem:[#allocation2 + $0x10] sm:$0xff]
  %v95 = vld [vmem:[#allocation2 + $0x28] sm:$0xff]
  %v96 = vld [vmem:[#allocation2 + $0x30] sm:$0xff]
  %v97 = vld [vmem:[#allocation2 + $0x48] sm:$0xff]
  %v98 = vld [vmem:[#allocation2 + $0x50] sm:$0xff]
  %v99 = vld [vmem:[#allocation2 + $0x68] sm:$0xff]
  %v100 = vld [vmem:[#allocation2 + $0x70] sm:$0xff]
  %v101 = vld [vmem:[#allocation2 + $0x88] sm:$0xff]
  %v102 = vld [vmem:[#allocation2 + $0x90] sm:$0xff]
  %v103 = vld [vmem:[#allocation2 + $0xa8] sm:$0xff]
  %v104 = vld [vmem:[#allocation2 + $0xb0] sm:$0xff]
  %v105 = vld [vmem:[#allocation2 + $0xc8] sm:$0xff]
  %v106 = vld [vmem:[#allocation2 + $0xd0] sm:$0xff]
  %v107 = vld [vmem:[#allocation2 + $0xe8] sm:$0xff]
  %v108 = vld [vmem:[#allocation2 + $0xf0] sm:$0xff]
  %s109 = scalar_lea.vmem %s1, 4
  %v110 = vld [vmem:[%s109] sm:$0xf]
  %v112 = vsel %vm59, %v93, 0
  %v115 = vsel %vm59, %v94, 0
  %v118 = vsel %vm59, %v95, 0
  %v121 = vsel %vm59, %v96, 0
  %v124 = vsel %vm59, %v97, 0
  %v127 = vsel %vm59, %v98, 0
  %v130 = vsel %vm59, %v99, 0
  %v133 = vsel %vm59, %v100, 0
  %v136 = vsel %vm59, %v101, 0
  %v139 = vsel %vm59, %v102, 0
  %v142 = vsel %vm59, %v103, 0
  %v145 = vsel %vm59, %v104, 0
  %v148 = vsel %vm59, %v105, 0
  %v151 = vsel %vm59, %v106, 0
  %v154 = vsel %vm59, %v107, 0
  %v157 = vsel %vm59, %v108, 0
  %vm159 = vcmask 1043456
  %v161 = vsel %vm159, %v110, 0
  %163 = vmatprep.subr.mxu0 0.0
  %164 = vmatpush1.msra.mxu0 %v161
  %165 = vmatprep.subr.mxu0 0.0
  %166 = vmatpush1.msra.mxu0 0.0
  %167 = vmatprep.subr.mxu0 0.0
  %168 = vmatpush1.msra.mxu0 0.0
  %169 = vmatprep.subr.mxu0 0.0
  %170 = vmatpush1.msra.mxu0 0.0
  %171 = vmatprep.subr.mxu0 0.0
  %172 = vmatpush1.msra.mxu0 0.0
  %173 = vmatprep.subr.mxu0 0.0
  %174 = vmatpush1.msra.mxu0 0.0
  %175 = vmatprep.subr.mxu0 0.0
  %176 = vmatpush1.msra.mxu0 0.0
  %177 = vmatprep.subr.mxu0 0.0
  %178 = vmatpush1.msra.mxu0 0.0
  %179 = vmatprep.subr.mxu0 0.0
  %180 = vmatpush1.msra.mxu0 0.0
  %181 = vmatprep.subr.mxu0 0.0
  %182 = vmatpush1.msra.mxu0 0.0
  %183 = vmatprep.subr.mxu0 0.0
  %184 = vmatpush1.msra.mxu0 0.0
  %185 = vmatprep.subr.mxu0 0.0
  %186 = vmatpush1.msra.mxu0 0.0
  %187 = vmatprep.subr.mxu0 0.0
  %188 = vmatpush1.msra.mxu0 0.0
  %189 = vmatprep.subr.mxu0 0.0
  %190 = vmatpush1.msra.mxu0 0.0
  %191 = vmatprep.subr.mxu0 0.0
  %192 = vmatpush1.msra.mxu0 0.0
  %193 = vmatprep.subr.mxu0 0.0
  %194 = vmatpush1.msra.mxu0 0.0
  %195 = vmatprep.subr.mxu0 0.0
  %196 = vmatpush1.msra.mxu0 0.0
  %197 = vmatprep.subr.mxu0 0.0
  %198 = vmatpush1.msra.mxu0 0.0
  %199 = vmatprep.subr.mxu0 0.0
  %200 = vmatpush1.msra.mxu0 0.0
  %201 = vmatprep.subr.mxu0 0.0
  %202 = vmatpush1.msra.mxu0 0.0
  %203 = vmatprep.subr.mxu0 0.0
  %204 = vmatpush1.msra.mxu0 0.0
  %205 = vmatprep.subr.mxu0 0.0
  %206 = vmatpush1.msra.mxu0 0.0
  %207 = vmatprep.subr.mxu0 0.0
  %208 = vmatpush1.msra.mxu0 0.0
  %209 = vmatprep.subr.mxu0 0.0
  %210 = vmatpush1.msra.mxu0 0.0
  %211 = vmatprep.subr.mxu0 0.0
  %212 = vmatpush1.msra.mxu0 0.0
  %213 = vmatprep.subr.mxu0 0.0
  %214 = vmatpush1.msra.mxu0 0.0
  %215 = vmatprep.subr.mxu0 0.0
  %216 = vmatpush1.msra.mxu0 0.0
  %217 = vmatprep.subr.mxu0 0.0
  %218 = vmatpush1.msra.mxu0 0.0
  %219 = vmatprep.subr.mxu0 0.0
  %220 = vmatpush1.msra.mxu0 0.0
  %221 = vmatprep.subr.mxu0 0.0
  %222 = vmatpush1.msra.mxu0 0.0
  %223 = vmatprep.subr.mxu0 0.0
  %224 = vmatpush1.msra.mxu0 0.0
  %225 = vmatprep.subr.mxu0 0.0
  %226 = vmatpush1.msra.mxu0 0.0
  %227 = vmatprep.mubr.f32.mxu0 0.0
  %228 = vmatmul.mubr.f32.gmra.mrb[0].mxu0 %v112
  %v229 = vpop.f32.mrb[0].mxu0
  %v230 = vadd.f32 0.0, %v229
  %v231 = vpop.f32.mrb[0].mxu0
  %232 = vmatprep.mubr.f32.mxu0 0.0
  %233 = vmatmul.mubr.f32.gmra.mrb[0].mxu0 %v115
  %v234 = vpop.f32.mrb[0].mxu0
  %v235 = vadd.f32 0.0, %v234
  %v236 = vpop.f32.mrb[0].mxu0
  %237 = vmatprep.mubr.f32.mxu0 0.0
  %238 = vmatmul.mubr.f32.gmra.mrb[0].mxu0 %v118
  %v239 = vpop.f32.mrb[0].mxu0
  %v240 = vadd.f32 0.0, %v239
  %v241 = vpop.f32.mrb[0].mxu0
  %242 = vmatprep.mubr.f32.mxu0 0.0
  %243 = vmatmul.mubr.f32.gmra.mrb[0].mxu0 %v121
  %v244 = vpop.f32.mrb[0].mxu0
  %v245 = vadd.f32 0.0, %v244
  %v246 = vpop.f32.mrb[0].mxu0
  %247 = vmatprep.mubr.f32.mxu0 0.0
  %248 = vmatmul.mubr.f32.gmra.mrb[0].mxu0 %v124
  %v249 = vpop.f32.mrb[0].mxu0
  %v250 = vadd.f32 0.0, %v249
  %v251 = vpop.f32.mrb[0].mxu0
  %252 = vmatprep.mubr.f32.mxu0 0.0
  %253 = vmatmul.mubr.f32.gmra.mrb[0].mxu0 %v127
  %v254 = vpop.f32.mrb[0].mxu0
  %v255 = vadd.f32 0.0, %v254
  %v256 = vpop.f32.mrb[0].mxu0
  %257 = vmatprep.mubr.f32.mxu0 0.0
  %258 = vmatmul.mubr.f32.gmra.mrb[0].mxu0 %v130
  %v259 = vpop.f32.mrb[0].mxu0
  %v260 = vadd.f32 0.0, %v259
  %v261 = vpop.f32.mrb[0].mxu0
  %262 = vmatprep.mubr.f32.mxu0 0.0
  %263 = vmatmul.mubr.f32.gmra.mrb[0].mxu0 %v133
  %v264 = vpop.f32.mrb[0].mxu0
  %v265 = vadd.f32 0.0, %v264
  %v266 = vpop.f32.mrb[0].mxu0
  %267 = vmatprep.mubr.f32.mxu0 0.0
  %268 = vmatmul.mubr.f32.gmra.mrb[0].mxu0 %v136
  %v269 = vpop.f32.mrb[0].mxu0
  %v270 = vadd.f32 0.0, %v269
  %v271 = vpop.f32.mrb[0].mxu0
  %272 = vmatprep.mubr.f32.mxu0 0.0
  %273 = vmatmul.mubr.f32.gmra.mrb[0].mxu0 %v139
  %v274 = vpop.f32.mrb[0].mxu0
  %v275 = vadd.f32 0.0, %v274
  %v276 = vpop.f32.mrb[0].mxu0
  %277 = vmatprep.mubr.f32.mxu0 0.0
  %278 = vmatmul.mubr.f32.gmra.mrb[0].mxu0 %v142
  %v279 = vpop.f32.mrb[0].mxu0
  %v280 = vadd.f32 0.0, %v279
  %v281 = vpop.f32.mrb[0].mxu0
  %282 = vmatprep.mubr.f32.mxu0 0.0
  %283 = vmatmul.mubr.f32.gmra.mrb[0].mxu0 %v145
  %v284 = vpop.f32.mrb[0].mxu0
  %v285 = vadd.f32 0.0, %v284
  %v286 = vpop.f32.mrb[0].mxu0
  %287 = vmatprep.mubr.f32.mxu0 0.0
  %288 = vmatmul.mubr.f32.gmra.mrb[0].mxu0 %v148
  %v289 = vpop.f32.mrb[0].mxu0
  %v290 = vadd.f32 0.0, %v289
  %v291 = vpop.f32.mrb[0].mxu0
  %292 = vmatprep.mubr.f32.mxu0 0.0
  %293 = vmatmul.mubr.f32.gmra.mrb[0].mxu0 %v151
  %v294 = vpop.f32.mrb[0].mxu0
  %v295 = vadd.f32 0.0, %v294
  %v296 = vpop.f32.mrb[0].mxu0
  %297 = vmatprep.mubr.f32.mxu0 0.0
  %298 = vmatmul.mubr.f32.gmra.mrb[0].mxu0 %v154
  %v299 = vpop.f32.mrb[0].mxu0
  %v300 = vadd.f32 0.0, %v299
  %v301 = vpop.f32.mrb[0].mxu0
  %302 = vmatprep.mubr.f32.mxu0 0.0
  %303 = vmatmul.mubr.f32.gmra.mrb[0].mxu0 %v157
  %v304 = vpop.f32.mrb[0].mxu0
  %v305 = vadd.f32 0.0, %v304
  %v306 = vpop.f32.mrb[0].mxu0
  %307 = vdwg.mxu0
  %v309 = vsel %vm59, %v76, 0
  %v312 = vsel %vm59, %v77, 0
  %v315 = vsel %vm59, %v78, 0
  %v318 = vsel %vm59, %v79, 0
  %v321 = vsel %vm59, %v80, 0
  %v324 = vsel %vm59, %v81, 0
  %v327 = vsel %vm59, %v82, 0
  %v330 = vsel %vm59, %v83, 0
  %v333 = vsel %vm59, %v84, 0
  %v336 = vsel %vm59, %v85, 0
  %v339 = vsel %vm59, %v86, 0
  %v342 = vsel %vm59, %v87, 0
  %v345 = vsel %vm59, %v88, 0
  %v348 = vsel %vm59, %v89, 0
  %v351 = vsel %vm59, %v90, 0
  %v354 = vsel %vm59, %v91, 0
  %v357 = vsel %vm159, %v92, 0
  %359 = vmatprep.subr.mxu0 0.0
  %360 = vmatpush1.msra.mxu0 %v357
  %361 = vmatprep.subr.mxu0 0.0
  %362 = vmatpush1.msra.mxu0 0.0
  %363 = vmatprep.subr.mxu0 0.0
  %364 = vmatpush1.msra.mxu0 0.0
  %365 = vmatprep.subr.mxu0 0.0
  %366 = vmatpush1.msra.mxu0 0.0
  %367 = vmatprep.subr.mxu0 0.0
  %368 = vmatpush1.msra.mxu0 0.0
  %369 = vmatprep.subr.mxu0 0.0
  %370 = vmatpush1.msra.mxu0 0.0
  %371 = vmatprep.subr.mxu0 0.0
  %372 = vmatpush1.msra.mxu0 0.0
  %373 = vmatprep.subr.mxu0 0.0
  %374 = vmatpush1.msra.mxu0 0.0
  %375 = vmatprep.subr.mxu0 0.0
  %376 = vmatpush1.msra.mxu0 0.0
  %377 = vmatprep.subr.mxu0 0.0
  %378 = vmatpush1.msra.mxu0 0.0
  %379 = vmatprep.subr.mxu0 0.0
  %380 = vmatpush1.msra.mxu0 0.0
  %381 = vmatprep.subr.mxu0 0.0
  %382 = vmatpush1.msra.mxu0 0.0
  %383 = vmatprep.subr.mxu0 0.0
  %384 = vmatpush1.msra.mxu0 0.0
  %385 = vmatprep.subr.mxu0 0.0
  %386 = vmatpush1.msra.mxu0 0.0
  %387 = vmatprep.subr.mxu0 0.0
  %388 = vmatpush1.msra.mxu0 0.0
  %389 = vmatprep.subr.mxu0 0.0
  %390 = vmatpush1.msra.mxu0 0.0
  %391 = vmatprep.subr.mxu0 0.0
  %392 = vmatpush1.msra.mxu0 0.0
  %393 = vmatprep.subr.mxu0 0.0
  %394 = vmatpush1.msra.mxu0 0.0
  %395 = vmatprep.subr.mxu0 0.0
  %396 = vmatpush1.msra.mxu0 0.0
  %397 = vmatprep.subr.mxu0 0.0
  %398 = vmatpush1.msra.mxu0 0.0
  %399 = vmatprep.subr.mxu0 0.0
  %400 = vmatpush1.msra.mxu0 0.0
  %401 = vmatprep.subr.mxu0 0.0
  %402 = vmatpush1.msra.mxu0 0.0
  %403 = vmatprep.subr.mxu0 0.0
  %404 = vmatpush1.msra.mxu0 0.0
  %405 = vmatprep.subr.mxu0 0.0
  %406 = vmatpush1.msra.mxu0 0.0
  %407 = vmatprep.subr.mxu0 0.0
  %408 = vmatpush1.msra.mxu0 0.0
  %409 = vmatprep.subr.mxu0 0.0
  %410 = vmatpush1.msra.mxu0 0.0
  %411 = vmatprep.subr.mxu0 0.0
  %412 = vmatpush1.msra.mxu0 0.0
  %413 = vmatprep.subr.mxu0 0.0
  %414 = vmatpush1.msra.mxu0 0.0
  %415 = vmatprep.subr.mxu0 0.0
  %416 = vmatpush1.msra.mxu0 0.0
  %417 = vmatprep.subr.mxu0 0.0
  %418 = vmatpush1.msra.mxu0 0.0
  %419 = vmatprep.subr.mxu0 0.0
  %420 = vmatpush1.msra.mxu0 0.0
  %421 = vmatprep.subr.mxu0 0.0
  %422 = vmatpush1.msra.mxu0 0.0
  %423 = vmatprep.mubr.f32.mxu0 0.0
  %424 = vmatmul.mubr.f32.gmra.mrb[0].mxu0 %v309
  %v425 = vpop.f32.mrb[0].mxu0
  %v426 = vadd.f32 %v230, %v425
  %v427 = vpop.f32.mrb[0].mxu0
  %428 = vmatprep.mubr.f32.mxu0 0.0
  %429 = vmatmul.mubr.f32.gmra.mrb[0].mxu0 %v312
  %v430 = vpop.f32.mrb[0].mxu0
  %v431 = vadd.f32 %v235, %v430
  %v432 = vpop.f32.mrb[0].mxu0
  %433 = vmatprep.mubr.f32.mxu0 0.0
  %434 = vmatmul.mubr.f32.gmra.mrb[0].mxu0 %v315
  %v435 = vpop.f32.mrb[0].mxu0
  %v436 = vadd.f32 %v240, %v435
  %v437 = vpop.f32.mrb[0].mxu0
  %438 = vmatprep.mubr.f32.mxu0 0.0
  %439 = vmatmul.mubr.f32.gmra.mrb[0].mxu0 %v318
  %v440 = vpop.f32.mrb[0].mxu0
  %v441 = vadd.f32 %v245, %v440
  %v442 = vpop.f32.mrb[0].mxu0
  %443 = vmatprep.mubr.f32.mxu0 0.0
  %444 = vmatmul.mubr.f32.gmra.mrb[0].mxu0 %v321
  %v445 = vpop.f32.mrb[0].mxu0
  %v446 = vadd.f32 %v250, %v445
  %v447 = vpop.f32.mrb[0].mxu0
  %448 = vmatprep.mubr.f32.mxu0 0.0
  %449 = vmatmul.mubr.f32.gmra.mrb[0].mxu0 %v324
  %v450 = vpop.f32.mrb[0].mxu0
  %v451 = vadd.f32 %v255, %v450
  %v452 = vpop.f32.mrb[0].mxu0
  %453 = vmatprep.mubr.f32.mxu0 0.0
  %454 = vmatmul.mubr.f32.gmra.mrb[0].mxu0 %v327
  %v455 = vpop.f32.mrb[0].mxu0
  %v456 = vadd.f32 %v260, %v455
  %v457 = vpop.f32.mrb[0].mxu0
  %458 = vmatprep.mubr.f32.mxu0 0.0
  %459 = vmatmul.mubr.f32.gmra.mrb[0].mxu0 %v330
  %v460 = vpop.f32.mrb[0].mxu0
  %v461 = vadd.f32 %v265, %v460
  %v462 = vpop.f32.mrb[0].mxu0
  %463 = vmatprep.mubr.f32.mxu0 0.0
  %464 = vmatmul.mubr.f32.gmra.mrb[0].mxu0 %v333
  %v465 = vpop.f32.mrb[0].mxu0
  %v466 = vadd.f32 %v270, %v465
  %v467 = vpop.f32.mrb[0].mxu0
  %468 = vmatprep.mubr.f32.mxu0 0.0
  %469 = vmatmul.mubr.f32.gmra.mrb[0].mxu0 %v336
  %v470 = vpop.f32.mrb[0].mxu0
  %v471 = vadd.f32 %v275, %v470
  %v472 = vpop.f32.mrb[0].mxu0
  %473 = vmatprep.mubr.f32.mxu0 0.0
  %474 = vmatmul.mubr.f32.gmra.mrb[0].mxu0 %v339
  %v475 = vpop.f32.mrb[0].mxu0
  %v476 = vadd.f32 %v280, %v475
  %v477 = vpop.f32.mrb[0].mxu0
  %478 = vmatprep.mubr.f32.mxu0 0.0
  %479 = vmatmul.mubr.f32.gmra.mrb[0].mxu0 %v342
  %v480 = vpop.f32.mrb[0].mxu0
  %v481 = vadd.f32 %v285, %v480
  %v482 = vpop.f32.mrb[0].mxu0
  %483 = vmatprep.mubr.f32.mxu0 0.0
  %484 = vmatmul.mubr.f32.gmra.mrb[0].mxu0 %v345
  %v485 = vpop.f32.mrb[0].mxu0
  %v486 = vadd.f32 %v290, %v485
  %v487 = vpop.f32.mrb[0].mxu0
  %488 = vmatprep.mubr.f32.mxu0 0.0
  %489 = vmatmul.mubr.f32.gmra.mrb[0].mxu0 %v348
  %v490 = vpop.f32.mrb[0].mxu0
  %v491 = vadd.f32 %v295, %v490
  %v492 = vpop.f32.mrb[0].mxu0
  %493 = vmatprep.mubr.f32.mxu0 0.0
  %494 = vmatmul.mubr.f32.gmra.mrb[0].mxu0 %v351
  %v495 = vpop.f32.mrb[0].mxu0
  %v496 = vadd.f32 %v300, %v495
  %v497 = vpop.f32.mrb[0].mxu0
  %498 = vmatprep.mubr.f32.mxu0 0.0
  %499 = vmatmul.mubr.f32.gmra.mrb[0].mxu0 %v354
  %v500 = vpop.f32.mrb[0].mxu0
  %v501 = vadd.f32 %v305, %v500
  %v502 = vpop.f32.mrb[0].mxu0
  %503 = vdwg.mxu0
  %v504 = vld [vmem:[#allocation2 + $0x9] sm:$0xff]
  %v505 = vld [vmem:[#allocation2 + $0x11] sm:$0xff]
  %v506 = vld [vmem:[#allocation2 + $0x29] sm:$0xff]
  %v507 = vld [vmem:[#allocation2 + $0x31] sm:$0xff]
  %v508 = vld [vmem:[#allocation2 + $0x49] sm:$0xff]
  %v509 = vld [vmem:[#allocation2 + $0x51] sm:$0xff]
  %v510 = vld [vmem:[#allocation2 + $0x69] sm:$0xff]
  %v511 = vld [vmem:[#allocation2 + $0x71] sm:$0xff]
  %v512 = vld [vmem:[#allocation2 + $0x89] sm:$0xff]
  %v513 = vld [vmem:[#allocation2 + $0x91] sm:$0xff]
  %v514 = vld [vmem:[#allocation2 + $0xa9] sm:$0xff]
  %v515 = vld [vmem:[#allocation2 + $0xb1] sm:$0xff]
  %v516 = vld [vmem:[#allocation2 + $0xc9] sm:$0xff]
  %v517 = vld [vmem:[#allocation2 + $0xd1] sm:$0xff]
  %v518 = vld [vmem:[#allocation2 + $0xe9] sm:$0xff]
  %v519 = vld [vmem:[#allocation2 + $0xf1] sm:$0xff]
  %s520 = scalar_lea.vmem %s1, 8
  %v521 = vld [vmem:[%s520] sm:$0xf]
  %v523 = vsel %vm59, %v504, 0
  %v526 = vsel %vm59, %v505, 0
  %v529 = vsel %vm59, %v506, 0
  %v532 = vsel %vm59, %v507, 0
  %v535 = vsel %vm59, %v508, 0
  %v538 = vsel %vm59, %v509, 0
  %v541 = vsel %vm59, %v510, 0
  %v544 = vsel %vm59, %v511, 0
  %v547 = vsel %vm59, %v512, 0
  %v550 = vsel %vm59, %v513, 0
  %v553 = vsel %vm59, %v514, 0
  %v556 = vsel %vm59, %v515, 0
  %v559 = vsel %vm59, %v516, 0
  %v562 = vsel %vm59, %v517, 0
  %v565 = vsel %vm59, %v518, 0
  %v568 = vsel %vm59, %v519, 0
  %v571 = vsel %vm159, %v521, 0
  %573 = vmatprep.subr.mxu0 0.0
  %574 = vmatpush1.msra.mxu0 %v571
  %575 = vmatprep.subr.mxu0 0.0
  %576 = vmatpush1.msra.mxu0 0.0
  %577 = vmatprep.subr.mxu0 0.0
  %578 = vmatpush1.msra.mxu0 0.0
  %579 = vmatprep.subr.mxu0 0.0
  %580 = vmatpush1.msra.mxu0 0.0
  %581 = vmatprep.subr.mxu0 0.0
  %582 = vmatpush1.msra.mxu0 0.0
  %583 = vmatprep.subr.mxu0 0.0
  %584 = vmatpush1.msra.mxu0 0.0
  %585 = vmatprep.subr.mxu0 0.0
  %586 = vmatpush1.msra.mxu0 0.0
  %587 = vmatprep.subr.mxu0 0.0
  %588 = vmatpush1.msra.mxu0 0.0
  %589 = vmatprep.subr.mxu0 0.0
  %590 = vmatpush1.msra.mxu0 0.0
  %591 = vmatprep.subr.mxu0 0.0
  %592 = vmatpush1.msra.mxu0 0.0
  %593 = vmatprep.subr.mxu0 0.0
  %594 = vmatpush1.msra.mxu0 0.0
  %595 = vmatprep.subr.mxu0 0.0
  %596 = vmatpush1.msra.mxu0 0.0
  %597 = vmatprep.subr.mxu0 0.0
  %598 = vmatpush1.msra.mxu0 0.0
  %599 = vmatprep.subr.mxu0 0.0
  %600 = vmatpush1.msra.mxu0 0.0
  %601 = vmatprep.subr.mxu0 0.0
  %602 = vmatpush1.msra.mxu0 0.0
  %603 = vmatprep.subr.mxu0 0.0
  %604 = vmatpush1.msra.mxu0 0.0
  %605 = vmatprep.subr.mxu0 0.0
  %606 = vmatpush1.msra.mxu0 0.0
  %607 = vmatprep.subr.mxu0 0.0
  %608 = vmatpush1.msra.mxu0 0.0
  %609 = vmatprep.subr.mxu0 0.0
  %610 = vmatpush1.msra.mxu0 0.0
  %611 = vmatprep.subr.mxu0 0.0
  %612 = vmatpush1.msra.mxu0 0.0
  %613 = vmatprep.subr.mxu0 0.0
  %614 = vmatpush1.msra.mxu0 0.0
  %615 = vmatprep.subr.mxu0 0.0
  %616 = vmatpush1.msra.mxu0 0.0
  %617 = vmatprep.subr.mxu0 0.0
  %618 = vmatpush1.msra.mxu0 0.0
  %619 = vmatprep.subr.mxu0 0.0
  %620 = vmatpush1.msra.mxu0 0.0
  %621 = vmatprep.subr.mxu0 0.0
  %622 = vmatpush1.msra.mxu0 0.0
  %623 = vmatprep.subr.mxu0 0.0
  %624 = vmatpush1.msra.mxu0 0.0
  %625 = vmatprep.subr.mxu0 0.0
  %626 = vmatpush1.msra.mxu0 0.0
  %627 = vmatprep.subr.mxu0 0.0
  %628 = vmatpush1.msra.mxu0 0.0
  %629 = vmatprep.subr.mxu0 0.0
  %630 = vmatpush1.msra.mxu0 0.0
  %631 = vmatprep.subr.mxu0 0.0
  %632 = vmatpush1.msra.mxu0 0.0
  %633 = vmatprep.subr.mxu0 0.0
  %634 = vmatpush1.msra.mxu0 0.0
  %635 = vmatprep.subr.mxu0 0.0
  %636 = vmatpush1.msra.mxu0 0.0
  %637 = vmatprep.mubr.f32.mxu0 0.0
  %638 = vmatmul.mubr.f32.gmra.mrb[0].mxu0 %v523
  %v639 = vpop.f32.mrb[0].mxu0
  %v640 = vadd.f32 0.0, %v639
  %v641 = vpop.f32.mrb[0].mxu0
  %642 = vmatprep.mubr.f32.mxu0 0.0
  %643 = vmatmul.mubr.f32.gmra.mrb[0].mxu0 %v526
  %v644 = vpop.f32.mrb[0].mxu0
  %v645 = vadd.f32 0.0, %v644
  %v646 = vpop.f32.mrb[0].mxu0
  %647 = vmatprep.mubr.f32.mxu0 0.0
  %648 = vmatmul.mubr.f32.gmra.mrb[0].mxu0 %v529
  %v649 = vpop.f32.mrb[0].mxu0
  %v650 = vadd.f32 0.0, %v649
  %v651 = vpop.f32.mrb[0].mxu0
  %652 = vmatprep.mubr.f32.mxu0 0.0
  %653 = vmatmul.mubr.f32.gmra.mrb[0].mxu0 %v532
  %v654 = vpop.f32.mrb[0].mxu0
  %v655 = vadd.f32 0.0, %v654
  %v656 = vpop.f32.mrb[0].mxu0
  %657 = vmatprep.mubr.f32.mxu0 0.0
  %658 = vmatmul.mubr.f32.gmra.mrb[0].mxu0 %v535
  %v659 = vpop.f32.mrb[0].mxu0
  %v660 = vadd.f32 0.0, %v659
  %v661 = vpop.f32.mrb[0].mxu0
  %662 = vmatprep.mubr.f32.mxu0 0.0
  %663 = vmatmul.mubr.f32.gmra.mrb[0].mxu0 %v538
  %v664 = vpop.f32.mrb[0].mxu0
  %v665 = vadd.f32 0.0, %v664
  %v666 = vpop.f32.mrb[0].mxu0
  %667 = vmatprep.mubr.f32.mxu0 0.0
  %668 = vmatmul.mubr.f32.gmra.mrb[0].mxu0 %v541
  %v669 = vpop.f32.mrb[0].mxu0
  %v670 = vadd.f32 0.0, %v669
  %v671 = vpop.f32.mrb[0].mxu0
  %672 = vmatprep.mubr.f32.mxu0 0.0
  %673 = vmatmul.mubr.f32.gmra.mrb[0].mxu0 %v544
  %v674 = vpop.f32.mrb[0].mxu0
  %v675 = vadd.f32 0.0, %v674
  %v676 = vpop.f32.mrb[0].mxu0
  %677 = vmatprep.mubr.f32.mxu0 0.0
  %678 = vmatmul.mubr.f32.gmra.mrb[0].mxu0 %v547
  %v679 = vpop.f32.mrb[0].mxu0
  %v680 = vadd.f32 0.0, %v679
  %v681 = vpop.f32.mrb[0].mxu0
  %682 = vmatprep.mubr.f32.mxu0 0.0
  %683 = vmatmul.mubr.f32.gmra.mrb[0].mxu0 %v550
  %v684 = vpop.f32.mrb[0].mxu0
  %v685 = vadd.f32 0.0, %v684
  %v686 = vpop.f32.mrb[0].mxu0
  %687 = vmatprep.mubr.f32.mxu0 0.0
  %688 = vmatmul.mubr.f32.gmra.mrb[0].mxu0 %v553
  %v689 = vpop.f32.mrb[0].mxu0
  %v690 = vadd.f32 0.0, %v689
  %v691 = vpop.f32.mrb[0].mxu0
  %692 = vmatprep.mubr.f32.mxu0 0.0
  %693 = vmatmul.mubr.f32.gmra.mrb[0].mxu0 %v556
  %v694 = vpop.f32.mrb[0].mxu0
  %v695 = vadd.f32 0.0, %v694
  %v696 = vpop.f32.mrb[0].mxu0
  %697 = vmatprep.mubr.f32.mxu0 0.0
  %698 = vmatmul.mubr.f32.gmra.mrb[0].mxu0 %v559
  %v699 = vpop.f32.mrb[0].mxu0
  %v700 = vadd.f32 0.0, %v699
  %v701 = vpop.f32.mrb[0].mxu0
  %702 = vmatprep.mubr.f32.mxu0 0.0
  %703 = vmatmul.mubr.f32.gmra.mrb[0].mxu0 %v562
  %v704 = vpop.f32.mrb[0].mxu0
  %v705 = vadd.f32 0.0, %v704
  %v706 = vpop.f32.mrb[0].mxu0
  %707 = vmatprep.mubr.f32.mxu0 0.0
  %708 = vmatmul.mubr.f32.gmra.mrb[0].mxu0 %v565
  %v709 = vpop.f32.mrb[0].mxu0
  %v710 = vadd.f32 0.0, %v709
  %v711 = vpop.f32.mrb[0].mxu0
  %712 = vmatprep.mubr.f32.mxu0 0.0
  %713 = vmatmul.mubr.f32.gmra.mrb[0].mxu0 %v568
  %v714 = vpop.f32.mrb[0].mxu0
  %v715 = vadd.f32 0.0, %v714
  %v716 = vpop.f32.mrb[0].mxu0
  %717 = vdwg.mxu0
  %v718 = vadd.f32 %v426, %v640
  %v719 = vadd.f32 %v431, %v645
  %v720 = vadd.f32 %v436, %v650
  %v721 = vadd.f32 %v441, %v655
  %v722 = vadd.f32 %v446, %v660
  %v723 = vadd.f32 %v451, %v665
  %v724 = vadd.f32 %v456, %v670
  %v725 = vadd.f32 %v461, %v675
  %v726 = vadd.f32 %v466, %v680
  %v727 = vadd.f32 %v471, %v685
  %v728 = vadd.f32 %v476, %v690
  %v729 = vadd.f32 %v481, %v695
  %v730 = vadd.f32 %v486, %v700
  %v731 = vadd.f32 %v491, %v705
  %v732 = vadd.f32 %v496, %v710
  %v733 = vadd.f32 %v501, %v715
  %v734 = vld [vmem:[%s2] sm:$0x1]
  %v736 = vlaneseq
  %v737 = vshrl.u32 %v736, 7
  %v738 = vsub.s32 0, %v737
  %v739 = vrot.slane %v734, %v738
  %v741 = vadd.f32 %v718, %v739
  %v742 = vadd.f32 %v719, %v739
  %v743 = vadd.f32 %v720, %v739
  %v744 = vadd.f32 %v721, %v739
  %v745 = vadd.f32 %v722, %v739
  %v746 = vadd.f32 %v723, %v739
  %v747 = vadd.f32 %v724, %v739
  %v748 = vadd.f32 %v725, %v739
  %v749 = vadd.f32 %v726, %v739
  %v750 = vadd.f32 %v727, %v739
  %v751 = vadd.f32 %v728, %v739
  %v752 = vadd.f32 %v729, %v739
  %v753 = vadd.f32 %v730, %v739
  %v754 = vadd.f32 %v731, %v739
  %v755 = vadd.f32 %v732, %v739
  %v756 = vadd.f32 %v733, %v739
  %v757 = vmax.f32 %v741, 0.0
  %v758 = vmax.f32 %v742, 0.0
  %v759 = vmax.f32 %v743, 0.0
  %v760 = vmax.f32 %v744, 0.0
  %v761 = vmax.f32 %v745, 0.0
  %v762 = vmax.f32 %v746, 0.0
  %v763 = vmax.f32 %v747, 0.0
  %v764 = vmax.f32 %v748, 0.0
  %v765 = vmax.f32 %v749, 0.0
  %v766 = vmax.f32 %v750, 0.0
  %v767 = vmax.f32 %v751, 0.0
  %v768 = vmax.f32 %v752, 0.0
  %v769 = vmax.f32 %v753, 0.0
  %v770 = vmax.f32 %v754, 0.0
  %v771 = vmax.f32 %v755, 0.0
  %v772 = vmax.f32 %v756, 0.0
  %vm773 = vcmask 57344
  %774 = vst.msk [vmem:[#allocation3 + $0x7] sm:$0x1] %vm773, 0.0
  %775 = vst.msk [vmem:[#allocation3 + $0x27] sm:$0x1] %vm773, 0.0
  %776 = vst.msk [vmem:[#allocation3 + $0x47] sm:$0x1] %vm773, 0.0
  %777 = vst.msk [vmem:[#allocation3 + $0x67] sm:$0x1] %vm773, 0.0
  %778 = vst.msk [vmem:[#allocation3 + $0x87] sm:$0x1] %vm773, 0.0
  %779 = vst.msk [vmem:[#allocation3 + $0xa7] sm:$0x1] %vm773, 0.0
  %780 = vst.msk [vmem:[#allocation3 + $0xc7] sm:$0x1] %vm773, 0.0
  %781 = vst.msk [vmem:[#allocation3 + $0xe7] sm:$0x1] %vm773, 0.0
  %782 = vst.msk [vmem:[#allocation3 + $0x18] sm:$0x1] %vm773, 0.0
  %783 = vst.msk [vmem:[#allocation3 + $0x38] sm:$0x1] %vm773, 0.0
  %784 = vst.msk [vmem:[#allocation3 + $0x58] sm:$0x1] %vm773, 0.0
  %785 = vst.msk [vmem:[#allocation3 + $0x78] sm:$0x1] %vm773, 0.0
  %786 = vst.msk [vmem:[#allocation3 + $0x98] sm:$0x1] %vm773, 0.0
  %787 = vst.msk [vmem:[#allocation3 + $0xb8] sm:$0x1] %vm773, 0.0
  %788 = vst.msk [vmem:[#allocation3 + $0xd8] sm:$0x1] %vm773, 0.0
  %789 = vst.msk [vmem:[#allocation3 + $0xf8] sm:$0x1] %vm773, 0.0
  %vm790 = vcmask 64512
  %791 = vst.msk [vmem:[#allocation3 + $0x8] sm:$0xff] %vm790, %v757
  %792 = vst.msk [vmem:[#allocation3 + $0x10] sm:$0xff] %vm790, %v758
  %793 = vst.msk [vmem:[#allocation3 + $0x28] sm:$0xff] %vm790, %v759
  %794 = vst.msk [vmem:[#allocation3 + $0x30] sm:$0xff] %vm790, %v760
  %795 = vst.msk [vmem:[#allocation3 + $0x48] sm:$0xff] %vm790, %v761
  %796 = vst.msk [vmem:[#allocation3 + $0x50] sm:$0xff] %vm790, %v762
  %797 = vst.msk [vmem:[#allocation3 + $0x68] sm:$0xff] %vm790, %v763
  %798 = vst.msk [vmem:[#allocation3 + $0x70] sm:$0xff] %vm790, %v764
  %799 = vst.msk [vmem:[#allocation3 + $0x88] sm:$0xff] %vm790, %v765
  %800 = vst.msk [vmem:[#allocation3 + $0x90] sm:$0xff] %vm790, %v766
  %801 = vst.msk [vmem:[#allocation3 + $0xa8] sm:$0xff] %vm790, %v767
  %802 = vst.msk [vmem:[#allocation3 + $0xb0] sm:$0xff] %vm790, %v768
  %803 = vst.msk [vmem:[#allocation3 + $0xc8] sm:$0xff] %vm790, %v769
  %804 = vst.msk [vmem:[#allocation3 + $0xd0] sm:$0xff] %vm790, %v770
  %805 = vst.msk [vmem:[#allocation3 + $0xe8] sm:$0xff] %vm790, %v771
  %806 = vst.msk [vmem:[#allocation3 + $0xf0] sm:$0xff] %vm790, %v772
  %v807 = vld [vmem:[#allocation3 + $0x7] sm:$0xff]
  %v808 = vld [vmem:[#allocation3 + $0xf] sm:$0xff]
  %v809 = vld [vmem:[#allocation3 + $0x27] sm:$0xff]
  %v810 = vld [vmem:[#allocation3 + $0x2f] sm:$0xff]
  %v811 = vld [vmem:[#allocation3 + $0x47] sm:$0xff]
  %v812 = vld [vmem:[#allocation3 + $0x4f] sm:$0xff]
  %v813 = vld [vmem:[#allocation3 + $0x67] sm:$0xff]
  %v814 = vld [vmem:[#allocation3 + $0x6f] sm:$0xff]
  %v815 = vld [vmem:[#allocation3 + $0x87] sm:$0xff]
  %v816 = vld [vmem:[#allocation3 + $0x8f] sm:$0xff]
  %v817 = vld [vmem:[#allocation3 + $0xa7] sm:$0xff]
  %v818 = vld [vmem:[#allocation3 + $0xaf] sm:$0xff]
  %v819 = vld [vmem:[#allocation3 + $0xc7] sm:$0xff]
  %v820 = vld [vmem:[#allocation3 + $0xcf] sm:$0xff]
  %v821 = vld [vmem:[#allocation3 + $0xe7] sm:$0xff]
  %v822 = vld [vmem:[#allocation3 + $0xef] sm:$0xff]
  %v823 = vld [vmem:[%s3] sm:$0xff]
  %v824 = vld [vmem:[#allocation3 + $0x8] sm:$0xff]
  %v825 = vld [vmem:[#allocation3 + $0x10] sm:$0xff]
  %v826 = vld [vmem:[#allocation3 + $0x28] sm:$0xff]
  %v827 = vld [vmem:[#allocation3 + $0x30] sm:$0xff]
  %v828 = vld [vmem:[#allocation3 + $0x48] sm:$0xff]
  %v829 = vld [vmem:[#allocation3 + $0x50] sm:$0xff]
  %v830 = vld [vmem:[#allocation3 + $0x68] sm:$0xff]
  %v831 = vld [vmem:[#allocation3 + $0x70] sm:$0xff]
  %v832 = vld [vmem:[#allocation3 + $0x88] sm:$0xff]
  %v833 = vld [vmem:[#allocation3 + $0x90] sm:$0xff]
  %v834 = vld [vmem:[#allocation3 + $0xa8] sm:$0xff]
  %v835 = vld [vmem:[#allocation3 + $0xb0] sm:$0xff]
  %v836 = vld [vmem:[#allocation3 + $0xc8] sm:$0xff]
  %v837 = vld [vmem:[#allocation3 + $0xd0] sm:$0xff]
  %v838 = vld [vmem:[#allocation3 + $0xe8] sm:$0xff]
  %v839 = vld [vmem:[#allocation3 + $0xf0] sm:$0xff]
  %s840 = scalar_lea.vmem %s3, 8
  %v841 = vld [vmem:[%s840] sm:$0xff]
  %v843 = vsel %vm790, %v824, 0
  %v846 = vsel %vm790, %v825, 0
  %v849 = vsel %vm790, %v826, 0
  %v852 = vsel %vm790, %v827, 0
  %v855 = vsel %vm790, %v828, 0
  %v858 = vsel %vm790, %v829, 0
  %v861 = vsel %vm790, %v830, 0
  %v864 = vsel %vm790, %v831, 0
  %v867 = vsel %vm790, %v832, 0
  %v870 = vsel %vm790, %v833, 0
  %v873 = vsel %vm790, %v834, 0
  %v876 = vsel %vm790, %v835, 0
  %v879 = vsel %vm790, %v836, 0
  %v882 = vsel %vm790, %v837, 0
  %v885 = vsel %vm790, %v838, 0
  %v888 = vsel %vm790, %v839, 0
  %890 = vmatprep.subr.mxu0 0.0
  %891 = vmatpush1.msra.mxu0 %v841
  %892 = vmatprep.subr.mxu0 0.0
  %893 = vmatpush1.msra.mxu0 0.0
  %894 = vmatprep.subr.mxu0 0.0
  %895 = vmatpush1.msra.mxu0 0.0
  %896 = vmatprep.subr.mxu0 0.0
  %897 = vmatpush1.msra.mxu0 0.0
  %898 = vmatprep.subr.mxu0 0.0
  %899 = vmatpush1.msra.mxu0 0.0
  %900 = vmatprep.subr.mxu0 0.0
  %901 = vmatpush1.msra.mxu0 0.0
  %902 = vmatprep.subr.mxu0 0.0
  %903 = vmatpush1.msra.mxu0 0.0
  %904 = vmatprep.subr.mxu0 0.0
  %905 = vmatpush1.msra.mxu0 0.0
  %906 = vmatprep.subr.mxu0 0.0
  %907 = vmatpush1.msra.mxu0 0.0
  %908 = vmatprep.subr.mxu0 0.0
  %909 = vmatpush1.msra.mxu0 0.0
  %910 = vmatprep.subr.mxu0 0.0
  %911 = vmatpush1.msra.mxu0 0.0
  %912 = vmatprep.subr.mxu0 0.0
  %913 = vmatpush1.msra.mxu0 0.0
  %914 = vmatprep.subr.mxu0 0.0
  %915 = vmatpush1.msra.mxu0 0.0
  %916 = vmatprep.subr.mxu0 0.0
  %917 = vmatpush1.msra.mxu0 0.0
  %918 = vmatprep.subr.mxu0 0.0
  %919 = vmatpush1.msra.mxu0 0.0
  %920 = vmatprep.subr.mxu0 0.0
  %921 = vmatpush1.msra.mxu0 0.0
  %922 = vmatprep.subr.mxu0 0.0
  %923 = vmatpush1.msra.mxu0 0.0
  %924 = vmatprep.subr.mxu0 0.0
  %925 = vmatpush1.msra.mxu0 0.0
  %926 = vmatprep.subr.mxu0 0.0
  %927 = vmatpush1.msra.mxu0 0.0
  %928 = vmatprep.subr.mxu0 0.0
  %929 = vmatpush1.msra.mxu0 0.0
  %930 = vmatprep.subr.mxu0 0.0
  %931 = vmatpush1.msra.mxu0 0.0
  %932 = vmatprep.subr.mxu0 0.0
  %933 = vmatpush1.msra.mxu0 0.0
  %934 = vmatprep.subr.mxu0 0.0
  %935 = vmatpush1.msra.mxu0 0.0
  %936 = vmatprep.subr.mxu0 0.0
  %937 = vmatpush1.msra.mxu0 0.0
  %938 = vmatprep.subr.mxu0 0.0
  %939 = vmatpush1.msra.mxu0 0.0
  %940 = vmatprep.subr.mxu0 0.0
  %941 = vmatpush1.msra.mxu0 0.0
  %942 = vmatprep.subr.mxu0 0.0
  %943 = vmatpush1.msra.mxu0 0.0
  %944 = vmatprep.subr.mxu0 0.0
  %945 = vmatpush1.msra.mxu0 0.0
  %946 = vmatprep.subr.mxu0 0.0
  %947 = vmatpush1.msra.mxu0 0.0
  %948 = vmatprep.subr.mxu0 0.0
  %949 = vmatpush1.msra.mxu0 0.0
  %950 = vmatprep.subr.mxu0 0.0
  %951 = vmatpush1.msra.mxu0 0.0
  %952 = vmatprep.subr.mxu0 0.0
  %953 = vmatpush1.msra.mxu0 0.0
  %954 = vmatprep.mubr.f32.mxu0 0.0
  %955 = vmatmul.mubr.f32.gmra.mrb[0].mxu0 %v843
  %v956 = vpop.f32.mrb[0].mxu0
  %v957 = vadd.f32 0.0, %v956
  %v958 = vpop.f32.mrb[0].mxu0
  %959 = vmatprep.mubr.f32.mxu0 0.0
  %960 = vmatmul.mubr.f32.gmra.mrb[0].mxu0 %v846
  %v961 = vpop.f32.mrb[0].mxu0
  %v962 = vadd.f32 0.0, %v961
  %v963 = vpop.f32.mrb[0].mxu0
  %964 = vmatprep.mubr.f32.mxu0 0.0
  %965 = vmatmul.mubr.f32.gmra.mrb[0].mxu0 %v849
  %v966 = vpop.f32.mrb[0].mxu0
  %v967 = vadd.f32 0.0, %v966
  %v968 = vpop.f32.mrb[0].mxu0
  %969 = vmatprep.mubr.f32.mxu0 0.0
  %970 = vmatmul.mubr.f32.gmra.mrb[0].mxu0 %v852
  %v971 = vpop.f32.mrb[0].mxu0
  %v972 = vadd.f32 0.0, %v971
  %v973 = vpop.f32.mrb[0].mxu0
  %974 = vmatprep.mubr.f32.mxu0 0.0
  %975 = vmatmul.mubr.f32.gmra.mrb[0].mxu0 %v855
  %v976 = vpop.f32.mrb[0].mxu0
  %v977 = vadd.f32 0.0, %v976
  %v978 = vpop.f32.mrb[0].mxu0
  %979 = vmatprep.mubr.f32.mxu0 0.0
  %980 = vmatmul.mubr.f32.gmra.mrb[0].mxu0 %v858
  %v981 = vpop.f32.mrb[0].mxu0
  %v982 = vadd.f32 0.0, %v981
  %v983 = vpop.f32.mrb[0].mxu0
  %984 = vmatprep.mubr.f32.mxu0 0.0
  %985 = vmatmul.mubr.f32.gmra.mrb[0].mxu0 %v861
  %v986 = vpop.f32.mrb[0].mxu0
  %v987 = vadd.f32 0.0, %v986
  %v988 = vpop.f32.mrb[0].mxu0
  %989 = vmatprep.mubr.f32.mxu0 0.0
  %990 = vmatmul.mubr.f32.gmra.mrb[0].mxu0 %v864
  %v991 = vpop.f32.mrb[0].mxu0
  %v992 = vadd.f32 0.0, %v991
  %v993 = vpop.f32.mrb[0].mxu0
  %994 = vmatprep.mubr.f32.mxu0 0.0
  %995 = vmatmul.mubr.f32.gmra.mrb[0].mxu0 %v867
  %v996 = vpop.f32.mrb[0].mxu0
  %v997 = vadd.f32 0.0, %v996
  %v998 = vpop.f32.mrb[0].mxu0
  %999 = vmatprep.mubr.f32.mxu0 0.0
  %1000 = vmatmul.mubr.f32.gmra.mrb[0].mxu0 %v870
  %v1001 = vpop.f32.mrb[0].mxu0
  %v1002 = vadd.f32 0.0, %v1001
  %v1003 = vpop.f32.mrb[0].mxu0
  %1004 = vmatprep.mubr.f32.mxu0 0.0
  %1005 = vmatmul.mubr.f32.gmra.mrb[0].mxu0 %v873
  %v1006 = vpop.f32.mrb[0].mxu0
  %v1007 = vadd.f32 0.0, %v1006
  %v1008 = vpop.f32.mrb[0].mxu0
  %1009 = vmatprep.mubr.f32.mxu0 0.0
  %1010 = vmatmul.mubr.f32.gmra.mrb[0].mxu0 %v876
  %v1011 = vpop.f32.mrb[0].mxu0
  %v1012 = vadd.f32 0.0, %v1011
  %v1013 = vpop.f32.mrb[0].mxu0
  %1014 = vmatprep.mubr.f32.mxu0 0.0
  %1015 = vmatmul.mubr.f32.gmra.mrb[0].mxu0 %v879
  %v1016 = vpop.f32.mrb[0].mxu0
  %v1017 = vadd.f32 0.0, %v1016
  %v1018 = vpop.f32.mrb[0].mxu0
  %1019 = vmatprep.mubr.f32.mxu0 0.0
  %1020 = vmatmul.mubr.f32.gmra.mrb[0].mxu0 %v882
  %v1021 = vpop.f32.mrb[0].mxu0
  %v1022 = vadd.f32 0.0, %v1021
  %v1023 = vpop.f32.mrb[0].mxu0
  %1024 = vmatprep.mubr.f32.mxu0 0.0
  %1025 = vmatmul.mubr.f32.gmra.mrb[0].mxu0 %v885
  %v1026 = vpop.f32.mrb[0].mxu0
  %v1027 = vadd.f32 0.0, %v1026
  %v1028 = vpop.f32.mrb[0].mxu0
  %1029 = vmatprep.mubr.f32.mxu0 0.0
  %1030 = vmatmul.mubr.f32.gmra.mrb[0].mxu0 %v888
  %v1031 = vpop.f32.mrb[0].mxu0
  %v1032 = vadd.f32 0.0, %v1031
  %v1033 = vpop.f32.mrb[0].mxu0
  %1034 = vdwg.mxu0
  %v1036 = vsel %vm790, %v807, 0
  %v1039 = vsel %vm790, %v808, 0
  %v1042 = vsel %vm790, %v809, 0
  %v1045 = vsel %vm790, %v810, 0
  %v1048 = vsel %vm790, %v811, 0
  %v1051 = vsel %vm790, %v812, 0
  %v1054 = vsel %vm790, %v813, 0
  %v1057 = vsel %vm790, %v814, 0
  %v1060 = vsel %vm790, %v815, 0
  %v1063 = vsel %vm790, %v816, 0
  %v1066 = vsel %vm790, %v817, 0
  %v1069 = vsel %vm790, %v818, 0
  %v1072 = vsel %vm790, %v819, 0
  %v1075 = vsel %vm790, %v820, 0
  %v1078 = vsel %vm790, %v821, 0
  %v1081 = vsel %vm790, %v822, 0
  %1083 = vmatprep.subr.mxu0 0.0
  %1084 = vmatpush1.msra.mxu0 %v823
  %1085 = vmatprep.subr.mxu0 0.0
  %1086 = vmatpush1.msra.mxu0 0.0
  %1087 = vmatprep.subr.mxu0 0.0
  %1088 = vmatpush1.msra.mxu0 0.0
  %1089 = vmatprep.subr.mxu0 0.0
  %1090 = vmatpush1.msra.mxu0 0.0
  %1091 = vmatprep.subr.mxu0 0.0
  %1092 = vmatpush1.msra.mxu0 0.0
  %1093 = vmatprep.subr.mxu0 0.0
  %1094 = vmatpush1.msra.mxu0 0.0
  %1095 = vmatprep.subr.mxu0 0.0
  %1096 = vmatpush1.msra.mxu0 0.0
  %1097 = vmatprep.subr.mxu0 0.0
  %1098 = vmatpush1.msra.mxu0 0.0
  %1099 = vmatprep.subr.mxu0 0.0
  %1100 = vmatpush1.msra.mxu0 0.0
  %1101 = vmatprep.subr.mxu0 0.0
  %1102 = vmatpush1.msra.mxu0 0.0
  %1103 = vmatprep.subr.mxu0 0.0
  %1104 = vmatpush1.msra.mxu0 0.0
  %1105 = vmatprep.subr.mxu0 0.0
  %1106 = vmatpush1.msra.mxu0 0.0
  %1107 = vmatprep.subr.mxu0 0.0
  %1108 = vmatpush1.msra.mxu0 0.0
  %1109 = vmatprep.subr.mxu0 0.0
  %1110 = vmatpush1.msra.mxu0 0.0
  %1111 = vmatprep.subr.mxu0 0.0
  %1112 = vmatpush1.msra.mxu0 0.0
  %1113 = vmatprep.subr.mxu0 0.0
  %1114 = vmatpush1.msra.mxu0 0.0
  %1115 = vmatprep.subr.mxu0 0.0
  %1116 = vmatpush1.msra.mxu0 0.0
  %1117 = vmatprep.subr.mxu0 0.0
  %1118 = vmatpush1.msra.mxu0 0.0
  %1119 = vmatprep.subr.mxu0 0.0
  %1120 = vmatpush1.msra.mxu0 0.0
  %1121 = vmatprep.subr.mxu0 0.0
  %1122 = vmatpush1.msra.mxu0 0.0
  %1123 = vmatprep.subr.mxu0 0.0
  %1124 = vmatpush1.msra.mxu0 0.0
  %1125 = vmatprep.subr.mxu0 0.0
  %1126 = vmatpush1.msra.mxu0 0.0
  %1127 = vmatprep.subr.mxu0 0.0
  %1128 = vmatpush1.msra.mxu0 0.0
  %1129 = vmatprep.subr.mxu0 0.0
  %1130 = vmatpush1.msra.mxu0 0.0
  %1131 = vmatprep.subr.mxu0 0.0
  %1132 = vmatpush1.msra.mxu0 0.0
  %1133 = vmatprep.subr.mxu0 0.0
  %1134 = vmatpush1.msra.mxu0 0.0
  %1135 = vmatprep.subr.mxu0 0.0
  %1136 = vmatpush1.msra.mxu0 0.0
  %1137 = vmatprep.subr.mxu0 0.0
  %1138 = vmatpush1.msra.mxu0 0.0
  %1139 = vmatprep.subr.mxu0 0.0
  %1140 = vmatpush1.msra.mxu0 0.0
  %1141 = vmatprep.subr.mxu0 0.0
  %1142 = vmatpush1.msra.mxu0 0.0
  %1143 = vmatprep.subr.mxu0 0.0
  %1144 = vmatpush1.msra.mxu0 0.0
  %1145 = vmatprep.subr.mxu0 0.0
  %1146 = vmatpush1.msra.mxu0 0.0
  %1147 = vmatprep.mubr.f32.mxu0 0.0
  %1148 = vmatmul.mubr.f32.gmra.mrb[0].mxu0 %v1036
  %v1149 = vpop.f32.mrb[0].mxu0
  %v1150 = vadd.f32 %v957, %v1149
  %v1151 = vpop.f32.mrb[0].mxu0
  %1152 = vmatprep.mubr.f32.mxu0 0.0
  %1153 = vmatmul.mubr.f32.gmra.mrb[0].mxu0 %v1039
  %v1154 = vpop.f32.mrb[0].mxu0
  %v1155 = vadd.f32 %v962, %v1154
  %v1156 = vpop.f32.mrb[0].mxu0
  %1157 = vmatprep.mubr.f32.mxu0 0.0
  %1158 = vmatmul.mubr.f32.gmra.mrb[0].mxu0 %v1042
  %v1159 = vpop.f32.mrb[0].mxu0
  %v1160 = vadd.f32 %v967, %v1159
  %v1161 = vpop.f32.mrb[0].mxu0
  %1162 = vmatprep.mubr.f32.mxu0 0.0
  %1163 = vmatmul.mubr.f32.gmra.mrb[0].mxu0 %v1045
  %v1164 = vpop.f32.mrb[0].mxu0
  %v1165 = vadd.f32 %v972, %v1164
  %v1166 = vpop.f32.mrb[0].mxu0
  %1167 = vmatprep.mubr.f32.mxu0 0.0
  %1168 = vmatmul.mubr.f32.gmra.mrb[0].mxu0 %v1048
  %v1169 = vpop.f32.mrb[0].mxu0
  %v1170 = vadd.f32 %v977, %v1169
  %v1171 = vpop.f32.mrb[0].mxu0
  %1172 = vmatprep.mubr.f32.mxu0 0.0
  %1173 = vmatmul.mubr.f32.gmra.mrb[0].mxu0 %v1051
  %v1174 = vpop.f32.mrb[0].mxu0
  %v1175 = vadd.f32 %v982, %v1174
  %v1176 = vpop.f32.mrb[0].mxu0
  %1177 = vmatprep.mubr.f32.mxu0 0.0
  %1178 = vmatmul.mubr.f32.gmra.mrb[0].mxu0 %v1054
  %v1179 = vpop.f32.mrb[0].mxu0
  %v1180 = vadd.f32 %v987, %v1179
  %v1181 = vpop.f32.mrb[0].mxu0
  %1182 = vmatprep.mubr.f32.mxu0 0.0
  %1183 = vmatmul.mubr.f32.gmra.mrb[0].mxu0 %v1057
  %v1184 = vpop.f32.mrb[0].mxu0
  %v1185 = vadd.f32 %v992, %v1184
  %v1186 = vpop.f32.mrb[0].mxu0
  %1187 = vmatprep.mubr.f32.mxu0 0.0
  %1188 = vmatmul.mubr.f32.gmra.mrb[0].mxu0 %v1060
  %v1189 = vpop.f32.mrb[0].mxu0
  %v1190 = vadd.f32 %v997, %v1189
  %v1191 = vpop.f32.mrb[0].mxu0
  %1192 = vmatprep.mubr.f32.mxu0 0.0
  %1193 = vmatmul.mubr.f32.gmra.mrb[0].mxu0 %v1063
  %v1194 = vpop.f32.mrb[0].mxu0
  %v1195 = vadd.f32 %v1002, %v1194
  %v1196 = vpop.f32.mrb[0].mxu0
  %1197 = vmatprep.mubr.f32.mxu0 0.0
  %1198 = vmatmul.mubr.f32.gmra.mrb[0].mxu0 %v1066
  %v1199 = vpop.f32.mrb[0].mxu0
  %v1200 = vadd.f32 %v1007, %v1199
  %v1201 = vpop.f32.mrb[0].mxu0
  %1202 = vmatprep.mubr.f32.mxu0 0.0
  %1203 = vmatmul.mubr.f32.gmra.mrb[0].mxu0 %v1069
  %v1204 = vpop.f32.mrb[0].mxu0
  %v1205 = vadd.f32 %v1012, %v1204
  %v1206 = vpop.f32.mrb[0].mxu0
  %1207 = vmatprep.mubr.f32.mxu0 0.0
  %1208 = vmatmul.mubr.f32.gmra.mrb[0].mxu0 %v1072
  %v1209 = vpop.f32.mrb[0].mxu0
  %v1210 = vadd.f32 %v1017, %v1209
  %v1211 = vpop.f32.mrb[0].mxu0
  %1212 = vmatprep.mubr.f32.mxu0 0.0
  %1213 = vmatmul.mubr.f32.gmra.mrb[0].mxu0 %v1075
  %v1214 = vpop.f32.mrb[0].mxu0
  %v1215 = vadd.f32 %v1022, %v1214
  %v1216 = vpop.f32.mrb[0].mxu0
  %1217 = vmatprep.mubr.f32.mxu0 0.0
  %1218 = vmatmul.mubr.f32.gmra.mrb[0].mxu0 %v1078
  %v1219 = vpop.f32.mrb[0].mxu0
  %v1220 = vadd.f32 %v1027, %v1219
  %v1221 = vpop.f32.mrb[0].mxu0
  %1222 = vmatprep.mubr.f32.mxu0 0.0
  %1223 = vmatmul.mubr.f32.gmra.mrb[0].mxu0 %v1081
  %v1224 = vpop.f32.mrb[0].mxu0
  %v1225 = vadd.f32 %v1032, %v1224
  %v1226 = vpop.f32.mrb[0].mxu0
  %1227 = vdwg.mxu0
  %v1228 = vld [vmem:[#allocation3 + $0x9] sm:$0xff]
  %v1229 = vld [vmem:[#allocation3 + $0x11] sm:$0xff]
  %v1230 = vld [vmem:[#allocation3 + $0x29] sm:$0xff]
  %v1231 = vld [vmem:[#allocation3 + $0x31] sm:$0xff]
  %v1232 = vld [vmem:[#allocation3 + $0x49] sm:$0xff]
  %v1233 = vld [vmem:[#allocation3 + $0x51] sm:$0xff]
  %v1234 = vld [vmem:[#allocation3 + $0x69] sm:$0xff]
  %v1235 = vld [vmem:[#allocation3 + $0x71] sm:$0xff]
  %v1236 = vld [vmem:[#allocation3 + $0x89] sm:$0xff]
  %v1237 = vld [vmem:[#allocation3 + $0x91] sm:$0xff]
  %v1238 = vld [vmem:[#allocation3 + $0xa9] sm:$0xff]
  %v1239 = vld [vmem:[#allocation3 + $0xb1] sm:$0xff]
  %v1240 = vld [vmem:[#allocation3 + $0xc9] sm:$0xff]
  %v1241 = vld [vmem:[#allocation3 + $0xd1] sm:$0xff]
  %v1242 = vld [vmem:[#allocation3 + $0xe9] sm:$0xff]
  %v1243 = vld [vmem:[#allocation3 + $0xf1] sm:$0xff]
  %s1244 = scalar_lea.vmem %s3, 16
  %v1245 = vld [vmem:[%s1244] sm:$0xff]
  %v1247 = vsel %vm790, %v1228, 0
  %v1250 = vsel %vm790, %v1229, 0
  %v1253 = vsel %vm790, %v1230, 0
  %v1256 = vsel %vm790, %v1231, 0
  %v1259 = vsel %vm790, %v1232, 0
  %v1262 = vsel %vm790, %v1233, 0
  %v1265 = vsel %vm790, %v1234, 0
  %v1268 = vsel %vm790, %v1235, 0
  %v1271 = vsel %vm790, %v1236, 0
  %v1274 = vsel %vm790, %v1237, 0
  %v1277 = vsel %vm790, %v1238, 0
  %v1280 = vsel %vm790, %v1239, 0
  %v1283 = vsel %vm790, %v1240, 0
  %v1286 = vsel %vm790, %v1241, 0
  %v1289 = vsel %vm790, %v1242, 0
  %v1292 = vsel %vm790, %v1243, 0
  %1294 = vmatprep.subr.mxu0 0.0
  %1295 = vmatpush1.msra.mxu0 %v1245
  %1296 = vmatprep.subr.mxu0 0.0
  %1297 = vmatpush1.msra.mxu0 0.0
  %1298 = vmatprep.subr.mxu0 0.0
  %1299 = vmatpush1.msra.mxu0 0.0
  %1300 = vmatprep.subr.mxu0 0.0
  %1301 = vmatpush1.msra.mxu0 0.0
  %1302 = vmatprep.subr.mxu0 0.0
  %1303 = vmatpush1.msra.mxu0 0.0
  %1304 = vmatprep.subr.mxu0 0.0
  %1305 = vmatpush1.msra.mxu0 0.0
  %1306 = vmatprep.subr.mxu0 0.0
  %1307 = vmatpush1.msra.mxu0 0.0
  %1308 = vmatprep.subr.mxu0 0.0
  %1309 = vmatpush1.msra.mxu0 0.0
  %1310 = vmatprep.subr.mxu0 0.0
  %1311 = vmatpush1.msra.mxu0 0.0
  %1312 = vmatprep.subr.mxu0 0.0
  %1313 = vmatpush1.msra.mxu0 0.0
  %1314 = vmatprep.subr.mxu0 0.0
  %1315 = vmatpush1.msra.mxu0 0.0
  %1316 = vmatprep.subr.mxu0 0.0
  %1317 = vmatpush1.msra.mxu0 0.0
  %1318 = vmatprep.subr.mxu0 0.0
  %1319 = vmatpush1.msra.mxu0 0.0
  %1320 = vmatprep.subr.mxu0 0.0
  %1321 = vmatpush1.msra.mxu0 0.0
  %1322 = vmatprep.subr.mxu0 0.0
  %1323 = vmatpush1.msra.mxu0 0.0
  %1324 = vmatprep.subr.mxu0 0.0
  %1325 = vmatpush1.msra.mxu0 0.0
  %1326 = vmatprep.subr.mxu0 0.0
  %1327 = vmatpush1.msra.mxu0 0.0
  %1328 = vmatprep.subr.mxu0 0.0
  %1329 = vmatpush1.msra.mxu0 0.0
  %1330 = vmatprep.subr.mxu0 0.0
  %1331 = vmatpush1.msra.mxu0 0.0
  %1332 = vmatprep.subr.mxu0 0.0
  %1333 = vmatpush1.msra.mxu0 0.0
  %1334 = vmatprep.subr.mxu0 0.0
  %1335 = vmatpush1.msra.mxu0 0.0
  %1336 = vmatprep.subr.mxu0 0.0
  %1337 = vmatpush1.msra.mxu0 0.0
  %1338 = vmatprep.subr.mxu0 0.0
  %1339 = vmatpush1.msra.mxu0 0.0
  %1340 = vmatprep.subr.mxu0 0.0
  %1341 = vmatpush1.msra.mxu0 0.0
  %1342 = vmatprep.subr.mxu0 0.0
  %1343 = vmatpush1.msra.mxu0 0.0
  %1344 = vmatprep.subr.mxu0 0.0
  %1345 = vmatpush1.msra.mxu0 0.0
  %1346 = vmatprep.subr.mxu0 0.0
  %1347 = vmatpush1.msra.mxu0 0.0
  %1348 = vmatprep.subr.mxu0 0.0
  %1349 = vmatpush1.msra.mxu0 0.0
  %1350 = vmatprep.subr.mxu0 0.0
  %1351 = vmatpush1.msra.mxu0 0.0
  %1352 = vmatprep.subr.mxu0 0.0
  %1353 = vmatpush1.msra.mxu0 0.0
  %1354 = vmatprep.subr.mxu0 0.0
  %1355 = vmatpush1.msra.mxu0 0.0
  %1356 = vmatprep.subr.mxu0 0.0
  %1357 = vmatpush1.msra.mxu0 0.0
  %1358 = vmatprep.mubr.f32.mxu0 0.0
  %1359 = vmatmul.mubr.f32.gmra.mrb[0].mxu0 %v1247
  %v1360 = vpop.f32.mrb[0].mxu0
  %v1361 = vadd.f32 0.0, %v1360
  %v1362 = vpop.f32.mrb[0].mxu0
  %1363 = vmatprep.mubr.f32.mxu0 0.0
  %1364 = vmatmul.mubr.f32.gmra.mrb[0].mxu0 %v1250
  %v1365 = vpop.f32.mrb[0].mxu0
  %v1366 = vadd.f32 0.0, %v1365
  %v1367 = vpop.f32.mrb[0].mxu0
  %1368 = vmatprep.mubr.f32.mxu0 0.0
  %1369 = vmatmul.mubr.f32.gmra.mrb[0].mxu0 %v1253
  %v1370 = vpop.f32.mrb[0].mxu0
  %v1371 = vadd.f32 0.0, %v1370
  %v1372 = vpop.f32.mrb[0].mxu0
  %1373 = vmatprep.mubr.f32.mxu0 0.0
  %1374 = vmatmul.mubr.f32.gmra.mrb[0].mxu0 %v1256
  %v1375 = vpop.f32.mrb[0].mxu0
  %v1376 = vadd.f32 0.0, %v1375
  %v1377 = vpop.f32.mrb[0].mxu0
  %1378 = vmatprep.mubr.f32.mxu0 0.0
  %1379 = vmatmul.mubr.f32.gmra.mrb[0].mxu0 %v1259
  %v1380 = vpop.f32.mrb[0].mxu0
  %v1381 = vadd.f32 0.0, %v1380
  %v1382 = vpop.f32.mrb[0].mxu0
  %1383 = vmatprep.mubr.f32.mxu0 0.0
  %1384 = vmatmul.mubr.f32.gmra.mrb[0].mxu0 %v1262
  %v1385 = vpop.f32.mrb[0].mxu0
  %v1386 = vadd.f32 0.0, %v1385
  %v1387 = vpop.f32.mrb[0].mxu0
  %1388 = vmatprep.mubr.f32.mxu0 0.0
  %1389 = vmatmul.mubr.f32.gmra.mrb[0].mxu0 %v1265
  %v1390 = vpop.f32.mrb[0].mxu0
  %v1391 = vadd.f32 0.0, %v1390
  %v1392 = vpop.f32.mrb[0].mxu0
  %1393 = vmatprep.mubr.f32.mxu0 0.0
  %1394 = vmatmul.mubr.f32.gmra.mrb[0].mxu0 %v1268
  %v1395 = vpop.f32.mrb[0].mxu0
  %v1396 = vadd.f32 0.0, %v1395
  %v1397 = vpop.f32.mrb[0].mxu0
  %1398 = vmatprep.mubr.f32.mxu0 0.0
  %1399 = vmatmul.mubr.f32.gmra.mrb[0].mxu0 %v1271
  %v1400 = vpop.f32.mrb[0].mxu0
  %v1401 = vadd.f32 0.0, %v1400
  %v1402 = vpop.f32.mrb[0].mxu0
  %1403 = vmatprep.mubr.f32.mxu0 0.0
  %1404 = vmatmul.mubr.f32.gmra.mrb[0].mxu0 %v1274
  %v1405 = vpop.f32.mrb[0].mxu0
  %v1406 = vadd.f32 0.0, %v1405
  %v1407 = vpop.f32.mrb[0].mxu0
  %1408 = vmatprep.mubr.f32.mxu0 0.0
  %1409 = vmatmul.mubr.f32.gmra.mrb[0].mxu0 %v1277
  %v1410 = vpop.f32.mrb[0].mxu0
  %v1411 = vadd.f32 0.0, %v1410
  %v1412 = vpop.f32.mrb[0].mxu0
  %1413 = vmatprep.mubr.f32.mxu0 0.0
  %1414 = vmatmul.mubr.f32.gmra.mrb[0].mxu0 %v1280
  %v1415 = vpop.f32.mrb[0].mxu0
  %v1416 = vadd.f32 0.0, %v1415
  %v1417 = vpop.f32.mrb[0].mxu0
  %1418 = vmatprep.mubr.f32.mxu0 0.0
  %1419 = vmatmul.mubr.f32.gmra.mrb[0].mxu0 %v1283
  %v1420 = vpop.f32.mrb[0].mxu0
  %v1421 = vadd.f32 0.0, %v1420
  %v1422 = vpop.f32.mrb[0].mxu0
  %1423 = vmatprep.mubr.f32.mxu0 0.0
  %1424 = vmatmul.mubr.f32.gmra.mrb[0].mxu0 %v1286
  %v1425 = vpop.f32.mrb[0].mxu0
  %v1426 = vadd.f32 0.0, %v1425
  %v1427 = vpop.f32.mrb[0].mxu0
  %1428 = vmatprep.mubr.f32.mxu0 0.0
  %1429 = vmatmul.mubr.f32.gmra.mrb[0].mxu0 %v1289
  %v1430 = vpop.f32.mrb[0].mxu0
  %v1431 = vadd.f32 0.0, %v1430
  %v1432 = vpop.f32.mrb[0].mxu0
  %1433 = vmatprep.mubr.f32.mxu0 0.0
  %1434 = vmatmul.mubr.f32.gmra.mrb[0].mxu0 %v1292
  %v1435 = vpop.f32.mrb[0].mxu0
  %v1436 = vadd.f32 0.0, %v1435
  %v1437 = vpop.f32.mrb[0].mxu0
  %1438 = vdwg.mxu0
  %v1439 = vadd.f32 %v1150, %v1361
  %v1440 = vadd.f32 %v1155, %v1366
  %v1441 = vadd.f32 %v1160, %v1371
  %v1442 = vadd.f32 %v1165, %v1376
  %v1443 = vadd.f32 %v1170, %v1381
  %v1444 = vadd.f32 %v1175, %v1386
  %v1445 = vadd.f32 %v1180, %v1391
  %v1446 = vadd.f32 %v1185, %v1396
  %v1447 = vadd.f32 %v1190, %v1401
  %v1448 = vadd.f32 %v1195, %v1406
  %v1449 = vadd.f32 %v1200, %v1411
  %v1450 = vadd.f32 %v1205, %v1416
  %v1451 = vadd.f32 %v1210, %v1421
  %v1452 = vadd.f32 %v1215, %v1426
  %v1453 = vadd.f32 %v1220, %v1431
  %v1454 = vadd.f32 %v1225, %v1436
  %v1455 = vld [vmem:[%s4] sm:$0x1]
  %v1457 = vlaneseq
  %v1458 = vshrl.u32 %v1457, 7
  %v1459 = vsub.s32 0, %v1458
  %v1460 = vrot.slane %v1455, %v1459
  %v1462 = vadd.f32 %v1439, %v1460
  %v1463 = vadd.f32 %v1440, %v1460
  %v1464 = vadd.f32 %v1441, %v1460
  %v1465 = vadd.f32 %v1442, %v1460
  %v1466 = vadd.f32 %v1443, %v1460
  %v1467 = vadd.f32 %v1444, %v1460
  %v1468 = vadd.f32 %v1445, %v1460
  %v1469 = vadd.f32 %v1446, %v1460
  %v1470 = vadd.f32 %v1447, %v1460
  %v1471 = vadd.f32 %v1448, %v1460
  %v1472 = vadd.f32 %v1449, %v1460
  %v1473 = vadd.f32 %v1450, %v1460
  %v1474 = vadd.f32 %v1451, %v1460
  %v1475 = vadd.f32 %v1452, %v1460
  %v1476 = vadd.f32 %v1453, %v1460
  %v1477 = vadd.f32 %v1454, %v1460
  %v1478 = vmax.f32 %v1462, 0.0
  %v1479 = vmax.f32 %v1463, 0.0
  %v1480 = vmax.f32 %v1464, 0.0
  %v1481 = vmax.f32 %v1465, 0.0
  %v1482 = vmax.f32 %v1466, 0.0
  %v1483 = vmax.f32 %v1467, 0.0
  %v1484 = vmax.f32 %v1468, 0.0
  %v1485 = vmax.f32 %v1469, 0.0
  %v1486 = vmax.f32 %v1470, 0.0
  %v1487 = vmax.f32 %v1471, 0.0
  %v1488 = vmax.f32 %v1472, 0.0
  %v1489 = vmax.f32 %v1473, 0.0
  %v1490 = vmax.f32 %v1474, 0.0
  %v1491 = vmax.f32 %v1475, 0.0
  %v1492 = vmax.f32 %v1476, 0.0
  %v1493 = vmax.f32 %v1477, 0.0
  %v1494 = vld [vmem:[%s5] sm:$0xff]
  %v1495 = vld [vmem:[%s6] sm:$0x1]
  %v1497 = vlaneseq
  %v1498 = vshrl.u32 %v1497, 7
  %v1499 = vsub.s32 0, %v1498
  %v1500 = vrot.slane %v1495, %v1499
  %v1503 = vsel %vm790, %v1478, 0
  %v1506 = vsel %vm790, %v1479, 0
  %v1509 = vsel %vm790, %v1480, 0
  %v1512 = vsel %vm790, %v1481, 0
  %v1515 = vsel %vm790, %v1482, 0
  %v1518 = vsel %vm790, %v1483, 0
  %v1521 = vsel %vm790, %v1484, 0
  %v1524 = vsel %vm790, %v1485, 0
  %v1527 = vsel %vm790, %v1486, 0
  %v1530 = vsel %vm790, %v1487, 0
  %v1533 = vsel %vm790, %v1488, 0
  %v1536 = vsel %vm790, %v1489, 0
  %v1539 = vsel %vm790, %v1490, 0
  %v1542 = vsel %vm790, %v1491, 0
  %v1545 = vsel %vm790, %v1492, 0
  %v1548 = vsel %vm790, %v1493, 0
  %1550 = vmatprep.subr.mxu0 0.0
  %1551 = vmatpush1.msra.mxu0 %v1494
  %1552 = vmatprep.subr.mxu0 0.0
  %1553 = vmatpush1.msra.mxu0 0.0
  %1554 = vmatprep.subr.mxu0 0.0
  %1555 = vmatpush1.msra.mxu0 0.0
  %1556 = vmatprep.subr.mxu0 0.0
  %1557 = vmatpush1.msra.mxu0 0.0
  %1558 = vmatprep.subr.mxu0 0.0
  %1559 = vmatpush1.msra.mxu0 0.0
  %1560 = vmatprep.subr.mxu0 0.0
  %1561 = vmatpush1.msra.mxu0 0.0
  %1562 = vmatprep.subr.mxu0 0.0
  %1563 = vmatpush1.msra.mxu0 0.0
  %1564 = vmatprep.subr.mxu0 0.0
  %1565 = vmatpush1.msra.mxu0 0.0
  %1566 = vmatprep.subr.mxu0 0.0
  %1567 = vmatpush1.msra.mxu0 0.0
  %1568 = vmatprep.subr.mxu0 0.0
  %1569 = vmatpush1.msra.mxu0 0.0
  %1570 = vmatprep.subr.mxu0 0.0
  %1571 = vmatpush1.msra.mxu0 0.0
  %1572 = vmatprep.subr.mxu0 0.0
  %1573 = vmatpush1.msra.mxu0 0.0
  %1574 = vmatprep.subr.mxu0 0.0
  %1575 = vmatpush1.msra.mxu0 0.0
  %1576 = vmatprep.subr.mxu0 0.0
  %1577 = vmatpush1.msra.mxu0 0.0
  %1578 = vmatprep.subr.mxu0 0.0
  %1579 = vmatpush1.msra.mxu0 0.0
  %1580 = vmatprep.subr.mxu0 0.0
  %1581 = vmatpush1.msra.mxu0 0.0
  %1582 = vmatprep.subr.mxu0 0.0
  %1583 = vmatpush1.msra.mxu0 0.0
  %1584 = vmatprep.subr.mxu0 0.0
  %1585 = vmatpush1.msra.mxu0 0.0
  %1586 = vmatprep.subr.mxu0 0.0
  %1587 = vmatpush1.msra.mxu0 0.0
  %1588 = vmatprep.subr.mxu0 0.0
  %1589 = vmatpush1.msra.mxu0 0.0
  %1590 = vmatprep.subr.mxu0 0.0
  %1591 = vmatpush1.msra.mxu0 0.0
  %1592 = vmatprep.subr.mxu0 0.0
  %1593 = vmatpush1.msra.mxu0 0.0
  %1594 = vmatprep.subr.mxu0 0.0
  %1595 = vmatpush1.msra.mxu0 0.0
  %1596 = vmatprep.subr.mxu0 0.0
  %1597 = vmatpush1.msra.mxu0 0.0
  %1598 = vmatprep.subr.mxu0 0.0
  %1599 = vmatpush1.msra.mxu0 0.0
  %1600 = vmatprep.subr.mxu0 0.0
  %1601 = vmatpush1.msra.mxu0 0.0
  %1602 = vmatprep.subr.mxu0 0.0
  %1603 = vmatpush1.msra.mxu0 0.0
  %1604 = vmatprep.subr.mxu0 0.0
  %1605 = vmatpush1.msra.mxu0 0.0
  %1606 = vmatprep.subr.mxu0 0.0
  %1607 = vmatpush1.msra.mxu0 0.0
  %1608 = vmatprep.subr.mxu0 0.0
  %1609 = vmatpush1.msra.mxu0 0.0
  %1610 = vmatprep.subr.mxu0 0.0
  %1611 = vmatpush1.msra.mxu0 0.0
  %1612 = vmatprep.subr.mxu0 0.0
  %1613 = vmatpush1.msra.mxu0 0.0
  %1614 = vmatprep.mubr.f32.mxu0 0.0
  %1615 = vmatmul.mubr.f32.gmra.mrb[0].mxu0 %v1503
  %v1616 = vpop.f32.mrb[0].mxu0
  %v1617 = vadd.f32 %v1500, %v1616
  %v1618 = vpop.f32.mrb[0].mxu0
  %1619 = vmatprep.mubr.f32.mxu0 0.0
  %1620 = vmatmul.mubr.f32.gmra.mrb[0].mxu0 %v1506
  %v1621 = vpop.f32.mrb[0].mxu0
  %v1622 = vadd.f32 %v1500, %v1621
  %v1623 = vpop.f32.mrb[0].mxu0
  %1624 = vmatprep.mubr.f32.mxu0 0.0
  %1625 = vmatmul.mubr.f32.gmra.mrb[0].mxu0 %v1509
  %v1626 = vpop.f32.mrb[0].mxu0
  %v1627 = vadd.f32 %v1500, %v1626
  %v1628 = vpop.f32.mrb[0].mxu0
  %1629 = vmatprep.mubr.f32.mxu0 0.0
  %1630 = vmatmul.mubr.f32.gmra.mrb[0].mxu0 %v1512
  %v1631 = vpop.f32.mrb[0].mxu0
  %v1632 = vadd.f32 %v1500, %v1631
  %v1633 = vpop.f32.mrb[0].mxu0
  %1634 = vmatprep.mubr.f32.mxu0 0.0
  %1635 = vmatmul.mubr.f32.gmra.mrb[0].mxu0 %v1515
  %v1636 = vpop.f32.mrb[0].mxu0
  %v1637 = vadd.f32 %v1500, %v1636
  %v1638 = vpop.f32.mrb[0].mxu0
  %1639 = vmatprep.mubr.f32.mxu0 0.0
  %1640 = vmatmul.mubr.f32.gmra.mrb[0].mxu0 %v1518
  %v1641 = vpop.f32.mrb[0].mxu0
  %v1642 = vadd.f32 %v1500, %v1641
  %v1643 = vpop.f32.mrb[0].mxu0
  %1644 = vmatprep.mubr.f32.mxu0 0.0
  %1645 = vmatmul.mubr.f32.gmra.mrb[0].mxu0 %v1521
  %v1646 = vpop.f32.mrb[0].mxu0
  %v1647 = vadd.f32 %v1500, %v1646
  %v1648 = vpop.f32.mrb[0].mxu0
  %1649 = vmatprep.mubr.f32.mxu0 0.0
  %1650 = vmatmul.mubr.f32.gmra.mrb[0].mxu0 %v1524
  %v1651 = vpop.f32.mrb[0].mxu0
  %v1652 = vadd.f32 %v1500, %v1651
  %v1653 = vpop.f32.mrb[0].mxu0
  %1654 = vmatprep.mubr.f32.mxu0 0.0
  %1655 = vmatmul.mubr.f32.gmra.mrb[0].mxu0 %v1527
  %v1656 = vpop.f32.mrb[0].mxu0
  %v1657 = vadd.f32 %v1500, %v1656
  %v1658 = vpop.f32.mrb[0].mxu0
  %1659 = vmatprep.mubr.f32.mxu0 0.0
  %1660 = vmatmul.mubr.f32.gmra.mrb[0].mxu0 %v1530
  %v1661 = vpop.f32.mrb[0].mxu0
  %v1662 = vadd.f32 %v1500, %v1661
  %v1663 = vpop.f32.mrb[0].mxu0
  %1664 = vmatprep.mubr.f32.mxu0 0.0
  %1665 = vmatmul.mubr.f32.gmra.mrb[0].mxu0 %v1533
  %v1666 = vpop.f32.mrb[0].mxu0
  %v1667 = vadd.f32 %v1500, %v1666
  %v1668 = vpop.f32.mrb[0].mxu0
  %1669 = vmatprep.mubr.f32.mxu0 0.0
  %1670 = vmatmul.mubr.f32.gmra.mrb[0].mxu0 %v1536
  %v1671 = vpop.f32.mrb[0].mxu0
  %v1672 = vadd.f32 %v1500, %v1671
  %v1673 = vpop.f32.mrb[0].mxu0
  %1674 = vmatprep.mubr.f32.mxu0 0.0
  %1675 = vmatmul.mubr.f32.gmra.mrb[0].mxu0 %v1539
  %v1676 = vpop.f32.mrb[0].mxu0
  %v1677 = vadd.f32 %v1500, %v1676
  %v1678 = vpop.f32.mrb[0].mxu0
  %1679 = vmatprep.mubr.f32.mxu0 0.0
  %1680 = vmatmul.mubr.f32.gmra.mrb[0].mxu0 %v1542
  %v1681 = vpop.f32.mrb[0].mxu0
  %v1682 = vadd.f32 %v1500, %v1681
  %v1683 = vpop.f32.mrb[0].mxu0
  %1684 = vmatprep.mubr.f32.mxu0 0.0
  %1685 = vmatmul.mubr.f32.gmra.mrb[0].mxu0 %v1545
  %v1686 = vpop.f32.mrb[0].mxu0
  %v1687 = vadd.f32 %v1500, %v1686
  %v1688 = vpop.f32.mrb[0].mxu0
  %1689 = vmatprep.mubr.f32.mxu0 0.0
  %1690 = vmatmul.mubr.f32.gmra.mrb[0].mxu0 %v1548
  %v1691 = vpop.f32.mrb[0].mxu0
  %v1692 = vadd.f32 %v1500, %v1691
  %v1693 = vpop.f32.mrb[0].mxu0
  %1694 = vdwg.mxu0
  %1695 = vst.msk [vmem:[%s7] sm:$0xff] %vm790, %v1617
  %1696 = vst.msk [vmem:[%s7 + $0x8] sm:$0xff] %vm790, %v1622
  %1697 = vst.msk [vmem:[%s7 + $0x10] sm:$0xff] %vm790, %v1627
  %1698 = vst.msk [vmem:[%s7 + $0x18] sm:$0xff] %vm790, %v1632
  %1699 = vst.msk [vmem:[%s7 + $0x20] sm:$0xff] %vm790, %v1637
  %1700 = vst.msk [vmem:[%s7 + $0x28] sm:$0xff] %vm790, %v1642
  %1701 = vst.msk [vmem:[%s7 + $0x30] sm:$0xff] %vm790, %v1647
  %1702 = vst.msk [vmem:[%s7 + $0x38] sm:$0xff] %vm790, %v1652
  %1703 = vst.msk [vmem:[%s7 + $0x40] sm:$0xff] %vm790, %v1657
  %1704 = vst.msk [vmem:[%s7 + $0x48] sm:$0xff] %vm790, %v1662
  %1705 = vst.msk [vmem:[%s7 + $0x50] sm:$0xff] %vm790, %v1667
  %1706 = vst.msk [vmem:[%s7 + $0x58] sm:$0xff] %vm790, %v1672
  %1707 = vst.msk [vmem:[%s7 + $0x60] sm:$0xff] %vm790, %v1677
  %1708 = vst.msk [vmem:[%s7 + $0x68] sm:$0xff] %vm790, %v1682
  %1709 = vst.msk [vmem:[%s7 + $0x70] sm:$0xff] %vm790, %v1687
  %1710 = vst.msk [vmem:[%s7 + $0x78] sm:$0xff] %vm790, %v1692
  // Predicated region
  $region30: #{decoder_block_pallas_ncl.1} parent=0 // pred_check
    _
  $region31: #{decoder_block_pallas_ncl.1} parent=0 // pred_check_branch
    %1712 = sbr.rel (0) target = $region33
  $region32: #{decoder_block_pallas_ncl.1} parent=0 // pred_region
    _
  $region33: #{decoder_block_pallas_ncl.1} parent=0 // pred_fallthru
    _
  // Predicated region
  $region34: #{decoder_block_pallas_ncl.1} parent=0 // pred_check
    _
  $region35: #{decoder_block_pallas_ncl.1} parent=0 // pred_check_branch
    %1714 = sbr.rel (0) target = $region37
  $region36: #{decoder_block_pallas_ncl.1} parent=0 // pred_region
    _
  $region37: #{decoder_block_pallas_ncl.1} parent=0 // pred_fallthru
    _

</llo_original>
